<compile_context>
chip_gen: v7x
topology: tpu7x:2x2x1
jax: 0.10.0
libtpu: 0.0.40
codegen_flags: <defaults>
</compile_context>

<pallas_src>
import jax
import jax.numpy as jnp
from jax import lax
from jax.experimental import pallas as pl
from jax.experimental.pallas import tpu as pltpu

LANES = 128          # lane width / padded channel dim
KSIZE = 4            # Conv1d kernel size used by the Discriminator
TAIL = 8             # read-overshoot tail rows appended to every canvas
BN_EPS = 1e-5
NEG_SLOPE = 0.2


def _round_up(v, m):
    return (v + m - 1) // m * m


# --------------------------------------------------------------------------
# Fused whole-network kernel.
# Canvas layout (input, both scratches, output): rows = batch * R_layer
# (batch b occupies rows [b*R, b*R + l_out)), lanes = channels (padded).
# --------------------------------------------------------------------------
def _make_disc_kernel(cfgs, batch, r_out, c_in0, c_in_pad, tail):
    n_l = len(cfgs)

    def kernel(x_ref, w0_ref, w_rest_ref, aux_ref, o_ref, act_a, act_b):
        # Zero only the tiny read-overshoot tails so the kernel never consumes
        # uninitialized VMEM (no full-canvas zero fills).
        act_a[pl.ds(act_a.shape[0] - tail, tail), :] = jnp.zeros(
            (tail, LANES), act_a.dtype)
        act_b[pl.ds(act_b.shape[0] - tail, tail), :] = jnp.zeros(
            (tail, LANES), act_b.dtype)

        scratches = (act_a, act_b)
        src = x_ref
        for li, cfg in enumerate(cfgs):
            stride = cfg["stride"]
            l_out = cfg["l_out"]
            r_dst = r_out[li]
            out_rows = batch * r_dst
            padded = l_out != r_dst
            last = li == n_l - 1

            # ---- Conv1d: K shift-and-accumulate taps, batch-fused ----
            acc = None
            for k in range(KSIZE):
                if stride == 1:
                    xk = src[pl.ds(k, out_rows), :]
                else:
                    xk = src[pl.ds(k, out_rows, stride=stride), :]
                if li == 0:
                    # tiny C_in (2-3): VPU rank-1 accumulation, compact lanes
                    for c in range(c_in0):
                        w_row = w0_ref[pl.ds(k * c_in_pad + c, 1), :]
                        part = xk[:, c:c + 1] * w_row
                        acc = part if acc is None else acc + part
                else:
                    lhs = xk if xk.dtype == jnp.bfloat16 else xk.astype(
                        jnp.bfloat16)
                    part = jnp.dot(lhs, w_rest_ref[(li - 1) * KSIZE + k],
                                   preferred_element_type=jnp.float32)
                    acc = part if acc is None else acc + part

            if cfg["use_bias"]:
                acc = acc + aux_ref[pl.ds(3 * li + 0, 1), :]

            # valid-row mask: rows [b*r_dst + l_out, (b+1)*r_dst) are pad rows
            # between batch slabs; their taps may read stale/neighbouring data,
            # so keep them out of BN stats and zero them at writeback.
            if padded:
                row_ids = lax.broadcasted_iota(jnp.int32, (out_rows, 1), 0)
                valid = row_ids < l_out
                for b in range(1, batch):
                    lo = b * r_dst
                    valid = valid | ((row_ids >= lo) & (row_ids < lo + l_out))
                acc = jnp.where(valid, acc, 0.0)

            # ---- BatchNorm1d (training batch stats, centered two-pass) ----
            if cfg["use_bn"]:
                gamma = aux_ref[pl.ds(3 * li + 1, 1), :]
                beta = aux_ref[pl.ds(3 * li + 2, 1), :]
                inv_n = 1.0 / float(batch * l_out)
                mean = acc.sum(axis=0, keepdims=True) * inv_n
                d = acc - mean
                if padded:
                    d = jnp.where(valid, d, 0.0)
                var = (d * d).sum(axis=0, keepdims=True) * inv_n
                scale = lax.rsqrt(var + BN_EPS) * gamma
                y = d * scale + beta
            else:
                y = acc

            # ---- LeakyReLU(0.2) ----
            if cfg["use_act"]:
                y = jnp.where(y >= 0, y, NEG_SLOPE * y)

            # keep the "pad rows are zero" canvas invariant explicit
            if padded:
                y = jnp.where(valid, y, 0.0)

            # ---- writeback: last layer -> lane-dense output slab ----
            if last:
                o_ref[...] = y.astype(o_ref.dtype)
            else:
                dst = scratches[li % 2]
                dst[pl.ds(0, out_rows), :] = y.astype(dst.dtype)
                src = dst

    return kernel


# --------------------------------------------------------------------------
# Wrapper: boundary layout conversion + single fused pallas_call.
# --------------------------------------------------------------------------
def discriminator_forward(x, layers):
    """x: (B, C_in, L) f32 in PyTorch NCL layout. Returns (B, 1, L_out) f32."""
    B, C_in, L = (int(s) for s in x.shape)

    # ---- static per-layer geometry ----
    cfgs = []
    l_in = L
    for lyr in layers:
        c_out, c_in_l, k = (int(s) for s in lyr["w"].shape)
        assert k == KSIZE
        stride = int(lyr["stride"])
        l_out = (l_in - KSIZE) // stride + 1
        cfgs.append(dict(c_in=c_in_l, c_out=c_out, stride=stride,
                         l_in=l_in, l_out=l_out,
                         use_bias=bool(lyr["use_bias"]),
                         use_bn=bool(lyr["use_bn"]),
                         use_act=bool(lyr["use_act"])))
        l_in = l_out
    n_l = len(cfgs)

    # TODO(synk): channel tiling for >128 channels (production start_channels=64
    # reaches 256); fail loudly instead of silently truncating.
    for cfg in cfgs:
        if cfg["c_in"] > LANES or cfg["c_out"] > LANES:
            raise ValueError("discriminator_forward: layers with more than 128 "
                             "channels are not supported by this kernel yet")
    c_in_pad = max(8, _round_up(C_in, 8))
    if c_in_pad > LANES:
        raise ValueError("in_channels > 128 not supported")

    # ---- canvas geometry: per-batch row strides R chained backwards so that
    # R_src = stride * R_dst for every layer -> batch-fused strided tap reads
    # stay aligned to batch slabs.
    prod_after = [1] * n_l
    for li in range(n_l - 2, -1, -1):
        prod_after[li] = prod_after[li + 1] * cfgs[li + 1]["stride"]
    prod_all = prod_after[0] * cfgs[0]["stride"]
    r_last = 8
    for li, cfg in enumerate(cfgs):
        r_last = max(r_last, -(-cfg["l_out"] // prod_after[li]))
    r_last = max(r_last, -(-L // prod_all))
    r_last = _round_up(r_last, 8)
    r_out = [r_last * prod_after[li] for li in range(n_l)]
    r_in = r_last * prod_all

    # scratch canvases: act_a holds even layers' outputs, act_b odd layers'
    a_list = [B * r_out[li] for li in range(n_l - 1) if li % 2 == 0]
    b_list = [B * r_out[li] for li in range(n_l - 1) if li % 2 == 1]
    a_rows = (max(a_list) if a_list else 0) + TAIL
    b_rows = (max(b_list) if b_list else 0) + TAIL

    def _scratch_dtype(parity):
        readers = [cfgs[li + 1]["stride"] for li in range(n_l - 1)
                   if li % 2 == parity]
        # stride-2 consumers -> keep 32-bit (strided sublane loads stay f32)
        return jnp.float32 if (readers and max(readers) > 1) else jnp.bfloat16

    a_dtype = _scratch_dtype(0)
    b_dtype = _scratch_dtype(1)

    # ---- boundary layout conversion (lane-compact input, values pre-rounded
    # through bf16 to match the bf16-operand matmul precision policy) ----
    xt = jnp.transpose(x, (0, 2, 1)).astype(jnp.bfloat16).astype(jnp.float32)
    xt = jnp.pad(xt, ((0, 0), (0, r_in - L), (0, 0)))          # (B, r_in, C_in)
    x_compact = jnp.zeros((B * r_in + TAIL, c_in_pad), jnp.float32)
    x_compact = x_compact.at[:B * r_in, :C_in].set(xt.reshape(B * r_in, C_in))

    # ---- weights ----
    # layer 0: rows (k*c_in_pad + c) -> w[k, c, :], f32 (bf16-rounded values)
    w0 = jnp.zeros((KSIZE * c_in_pad, LANES), jnp.float32)
    w0_kio = jnp.transpose(layers[0]["w"], (2, 1, 0))            # (K, C_in, C_out)
    w0_kio = w0_kio.astype(jnp.bfloat16).astype(jnp.float32)
    for k in range(KSIZE):
        w0 = w0.at[k * c_in_pad:k * c_in_pad + C_in,
                   :cfgs[0]["c_out"]].set(w0_kio[k])

    # layers >= 1: packed (layer*K + k, C_in_pad=128, C_out_pad=128), bf16
    n_rest = max(n_l - 1, 1)
    w_rest = jnp.zeros((n_rest * KSIZE, LANES, LANES), jnp.float32)
    for li in range(1, n_l):
        cfg = cfgs[li]
        w_kio = jnp.transpose(layers[li]["w"], (2, 1, 0))
        w_rest = w_rest.at[(li - 1) * KSIZE:li * KSIZE,
                           :cfg["c_in"], :cfg["c_out"]].set(w_kio)
    w_rest = w_rest.astype(jnp.bfloat16)

    aux_rows = _round_up(3 * n_l, 8)
    aux = jnp.zeros((aux_rows, LANES), jnp.float32)
    for li, (lyr, cfg) in enumerate(zip(layers, cfgs)):
        aux = aux.at[3 * li + 0, :cfg["c_out"]].set(lyr["b"])
        aux = aux.at[3 * li + 1, :cfg["c_out"]].set(lyr["gamma"])
        aux = aux.at[3 * li + 2, :cfg["c_out"]].set(lyr["beta"])

    out_rows = B * r_out[-1]
    kernel = _make_disc_kernel(cfgs, B, r_out, C_in, c_in_pad, TAIL)

    def _full(shape):
        nd = len(shape)
        return pl.BlockSpec(tuple(shape), lambda i, _nd=nd: (0,) * _nd)

    # Need-based VMEM budget (do not hardcode the v7x-physical 64 MiB).
    def _itm(dt):
        return 4 if dt == jnp.float32 else 2
    need = (2 * (B * r_in + TAIL) * c_in_pad * 4
            + 2 * KSIZE * c_in_pad * LANES * 4
            + 2 * n_rest * KSIZE * LANES * LANES * 2
            + 2 * aux_rows * LANES * 4
            + 2 * out_rows * LANES * 4
            + a_rows * LANES * _itm(a_dtype)
            + b_rows * LANES * _itm(b_dtype))
    vmem_limit = int(min(max(2 * need, 16 * 2 ** 20), 48 * 2 ** 20))

    out = pl.pallas_call(
        kernel,
        out_shape=jax.ShapeDtypeStruct((out_rows, LANES), jnp.float32),
        grid_spec=pltpu.PrefetchScalarGridSpec(
            num_scalar_prefetch=0,
            grid=(1,),
            in_specs=[_full(x_compact.shape), _full(w0.shape),
                      _full(w_rest.shape), _full(aux.shape)],
            out_specs=_full((out_rows, LANES)),
            scratch_shapes=[pltpu.VMEM((a_rows, LANES), a_dtype),
                            pltpu.VMEM((b_rows, LANES), b_dtype)],
        ),
        compiler_params=pltpu.CompilerParams(
            dimension_semantics=("arbitrary",),
            vmem_limit_bytes=vmem_limit),
    )(x_compact, w0, w_rest, aux)

    # Back to PyTorch NCL at the network boundary only.
    c_last, l_last = cfgs[-1]["c_out"], cfgs[-1]["l_out"]
    out = out.reshape(B, r_out[-1], LANES)[:, :l_last, :c_last]
    return jnp.transpose(out, (0, 2, 1))


# --------------------------------------------------------------------------
# Parameter construction (mirrors Discriminator.__init__ + weights_init:
# conv weights ~ N(0, 0.02); BN weight ~ N(1, 0.02), BN bias = 0).
# --------------------------------------------------------------------------
def init_discriminator_params(key, in_channels=2, n_layers=2, start_channels=64):
    layers = []

    def conv_w(key, c_out, c_in):
        return 0.02 * jax.random.normal(key, (c_out, c_in, KSIZE), jnp.float32)

    def conv_b(key, c_out, c_in):
        bound = 1.0 / jnp.sqrt(c_in * KSIZE)
        return jax.random.uniform(key, (c_out,), jnp.float32, -bound, bound)

    def bn_params(key, c):
        gamma = 1.0 + 0.02 * jax.random.normal(key, (c,), jnp.float32)
        beta = jnp.zeros((c,), jnp.float32)
        return gamma, beta

    keys = jax.random.split(key, 4 * (n_layers + 2))
    ki = iter(range(len(keys)))

    # init_conv: Conv1d(in, start, k=4, s=2, padding=0, bias=True) + LeakyReLU
    prev = in_channels
    c = start_channels
    layers.append(dict(w=conv_w(keys[next(ki)], c, prev),
                       b=conv_b(keys[next(ki)], c, prev),
                       gamma=jnp.ones((c,), jnp.float32),
                       beta=jnp.zeros((c,), jnp.float32),
                       stride=2, use_bias=True, use_bn=False, use_act=True))
    prev = c

    # down-sampling blocks: Conv(no bias, s=2) + BN + LeakyReLU
    for n in range(1, n_layers):
        c = start_channels * min(2 ** n, 4)
        g, bt = bn_params(keys[next(ki)], c)
        layers.append(dict(w=conv_w(keys[next(ki)], c, prev),
                           b=jnp.zeros((c,), jnp.float32),
                           gamma=g, beta=bt,
                           stride=2, use_bias=False, use_bn=True, use_act=True))
        prev = c

    # last block: Conv(no bias, s=1) + BN + LeakyReLU
    c = start_channels * min(2 ** n_layers, 4)
    g, bt = bn_params(keys[next(ki)], c)
    layers.append(dict(w=conv_w(keys[next(ki)], c, prev),
                       b=jnp.zeros((c,), jnp.float32),
                       gamma=g, beta=bt,
                       stride=1, use_bias=False, use_bn=True, use_act=True))
    prev = c

    # out_conv: Conv1d(prev, 1, k=4, s=1, bias=True), no BN, no activation
    layers.append(dict(w=conv_w(keys[next(ki)], 1, prev),
                       b=conv_b(keys[next(ki)], 1, prev),
                       gamma=jnp.ones((1,), jnp.float32),
                       beta=jnp.zeros((1,), jnp.float32),
                       stride=1, use_bias=True, use_bn=False, use_act=False))
    return layers


# --------------------------------------------------------------------------
# Pure-JAX reference (lax.conv).  Same bf16-operand / f32-accum matmul policy
# as the kernel; bias / BN / activation stay in f32.
# --------------------------------------------------------------------------
def reference_forward(x, layers):
    y = x
    for lyr in layers:
        y = lax.conv_general_dilated(
            y.astype(jnp.bfloat16), lyr['w'].astype(jnp.bfloat16),
            window_strides=(lyr['stride'],), padding='VALID',
            dimension_numbers=('NCH', 'OIH', 'NCH'),
            preferred_element_type=jnp.float32)
        if lyr['use_bias']:
            y = y + lyr['b'][None, :, None]
        if lyr['use_bn']:
            mean = jnp.mean(y, axis=(0, 2), keepdims=True)
            var = jnp.mean(jnp.square(y - mean), axis=(0, 2), keepdims=True)
            y = ((y - mean) * lax.rsqrt(var + BN_EPS)
                 * lyr['gamma'][None, :, None] + lyr['beta'][None, :, None])
        if lyr['use_act']:
            y = jnp.where(y >= 0, y, NEG_SLOPE * y)
    return y


if __name__ == "__main__":
    key = jax.random.PRNGKey(0)
    k_param, k_x = jax.random.split(key)

    # Small, module-consistent config: in_channels=2, n_layers=2,
    # start_channels=16, input length L=64, batch=2.
    in_channels, n_layers, start_channels, L, B = 2, 2, 16, 64, 2
    layers = init_discriminator_params(k_param, in_channels, n_layers,
                                       start_channels)
    x = jax.random.normal(k_x, (B, in_channels, L), jnp.float32)  # NCL layout

    fwd = jax.jit(lambda xx: discriminator_forward(xx, layers))
    out = jax.block_until_ready(fwd(x))

    ref = jax.block_until_ready(reference_forward(x, layers))
    assert out.shape == ref.shape == (B, 1, 8), (out.shape, ref.shape)
    err = float(jnp.max(jnp.abs(out - ref)))
    assert jnp.allclose(out, ref, rtol=2e-3, atol=2e-3), err

    print("KERNEL_OK")
</pallas_src>

<mosaic_0001>
module attributes {stable_mosaic.version = 11 : i64} {
  func.func @kernel(%arg0: i32, %arg1: memref<136x8xf32, #tpu.memory_space<vmem>>, %arg2: memref<32x128xf32, #tpu.memory_space<vmem>>, %arg3: memref<12x128x128xbf16, #tpu.memory_space<vmem>>, %arg4: memref<16x128xf32, #tpu.memory_space<vmem>>, %arg5: memref<32x128xf32, #tpu.memory_space<vmem>>, %arg6: memref<72x128xf32, #tpu.memory_space<vmem>>, %arg7: memref<40x128xbf16, #tpu.memory_space<vmem>>) attributes {dimension_semantics = [#tpu.dimension_semantics<arbitrary>], iteration_bounds = array<i64: 1>, scalar_prefetch = 0 : i64, scratch_operands = 2 : i64, tpu.core_type = #tpu.core_type<tc>, window_params = [{pipeline_mode = #tpu.pipeline_mode<synchronous>, transform_indices = @transform_0, window_bounds = array<i64: 136, 8>}, {pipeline_mode = #tpu.pipeline_mode<synchronous>, transform_indices = @transform_1, window_bounds = array<i64: 32, 128>}, {pipeline_mode = #tpu.pipeline_mode<synchronous>, transform_indices = @transform_2, window_bounds = array<i64: 12, 128, 128>}, {pipeline_mode = #tpu.pipeline_mode<synchronous>, transform_indices = @transform_3, window_bounds = array<i64: 16, 128>}, {pipeline_mode = #tpu.pipeline_mode<synchronous>, transform_indices = @transform_4, window_bounds = array<i64: 32, 128>}]} {
    %cst = arith.constant 0.000000e+00 : f32
    %0 = vector.broadcast %cst : f32 to vector<8x128xf32>
    %c64 = arith.constant 64 : index
    %c0 = arith.constant 0 : index
    %1 = vector.load %arg6[%c64, %c0] : memref<72x128xf32, #tpu.memory_space<vmem>>, vector<8x128xf32>
    tpu.vector_store %arg6[%c64, %c0], %0 {strides = array<i32>} : memref<72x128xf32, #tpu.memory_space<vmem>>, vector<8x128xf32>,
    %cst_0 = arith.constant 0.000000e+00 : bf16
    %2 = vector.broadcast %cst_0 : bf16 to vector<8x128xbf16>
    %c32 = arith.constant 32 : index
    %c0_1 = arith.constant 0 : index
    %3 = vector.load %arg7[%c32, %c0_1] : memref<40x128xbf16, #tpu.memory_space<vmem>>, vector<8x128xbf16>
    tpu.vector_store %arg7[%c32, %c0_1], %2 {strides = array<i32>} : memref<40x128xbf16, #tpu.memory_space<vmem>>, vector<8x128xbf16>,
    %c0_2 = arith.constant 0 : index
    %c0_3 = arith.constant 0 : index
    %4 = tpu.strided_load %arg1[%c0_2, %c0_3] {strides = array<i32: 2, 1>} : memref<136x8xf32, #tpu.memory_space<vmem>>, vector<64x8xf32>
    %c0_4 = arith.constant 0 : index
    %c0_5 = arith.constant 0 : index
    %5 = vector.load %arg2[%c0_4, %c0_5] : memref<32x128xf32, #tpu.memory_space<vmem>>, vector<1x128xf32>
    %6 = vector.extract_strided_slice %4 {offsets = [0, 0], sizes = [64, 1], strides = [1, 1]} : vector<64x8xf32> to vector<64x1xf32>
    %7 = vector.broadcast %6 : vector<64x1xf32> to vector<64x128xf32>
    %8 = vector.broadcast %5 : vector<1x128xf32> to vector<64x128xf32>
    %9 = arith.mulf %7, %8 : vector<64x128xf32>
    %c1 = arith.constant 1 : index
    %c0_6 = arith.constant 0 : index
    %10 = vector.load %arg2[%c1, %c0_6] : memref<32x128xf32, #tpu.memory_space<vmem>>, vector<1x128xf32>
    %11 = vector.extract_strided_slice %4 {offsets = [0, 1], sizes = [64, 1], strides = [1, 1]} : vector<64x8xf32> to vector<64x1xf32>
    %12 = vector.broadcast %11 : vector<64x1xf32> to vector<64x128xf32>
    %13 = vector.broadcast %10 : vector<1x128xf32> to vector<64x128xf32>
    %14 = arith.mulf %12, %13 : vector<64x128xf32>
    %15 = arith.addf %9, %14 : vector<64x128xf32>
    %c1_7 = arith.constant 1 : index
    %c0_8 = arith.constant 0 : index
    %16 = tpu.strided_load %arg1[%c1_7, %c0_8] {strides = array<i32: 2, 1>} : memref<136x8xf32, #tpu.memory_space<vmem>>, vector<64x8xf32>
    %c8 = arith.constant 8 : index
    %c0_9 = arith.constant 0 : index
    %17 = vector.load %arg2[%c8, %c0_9] : memref<32x128xf32, #tpu.memory_space<vmem>>, vector<1x128xf32>
    %18 = vector.extract_strided_slice %16 {offsets = [0, 0], sizes = [64, 1], strides = [1, 1]} : vector<64x8xf32> to vector<64x1xf32>
    %19 = vector.broadcast %18 : vector<64x1xf32> to vector<64x128xf32>
    %20 = vector.broadcast %17 : vector<1x128xf32> to vector<64x128xf32>
    %21 = arith.mulf %19, %20 : vector<64x128xf32>
    %22 = arith.addf %15, %21 : vector<64x128xf32>
    %c9 = arith.constant 9 : index
    %c0_10 = arith.constant 0 : index
    %23 = vector.load %arg2[%c9, %c0_10] : memref<32x128xf32, #tpu.memory_space<vmem>>, vector<1x128xf32>
    %24 = vector.extract_strided_slice %16 {offsets = [0, 1], sizes = [64, 1], strides = [1, 1]} : vector<64x8xf32> to vector<64x1xf32>
    %25 = vector.broadcast %24 : vector<64x1xf32> to vector<64x128xf32>
    %26 = vector.broadcast %23 : vector<1x128xf32> to vector<64x128xf32>
    %27 = arith.mulf %25, %26 : vector<64x128xf32>
    %28 = arith.addf %22, %27 : vector<64x128xf32>
    %c2 = arith.constant 2 : index
    %c0_11 = arith.constant 0 : index
    %29 = tpu.strided_load %arg1[%c2, %c0_11] {strides = array<i32: 2, 1>} : memref<136x8xf32, #tpu.memory_space<vmem>>, vector<64x8xf32>
    %c16 = arith.constant 16 : index
    %c0_12 = arith.constant 0 : index
    %30 = vector.load %arg2[%c16, %c0_12] : memref<32x128xf32, #tpu.memory_space<vmem>>, vector<1x128xf32>
    %31 = vector.extract_strided_slice %29 {offsets = [0, 0], sizes = [64, 1], strides = [1, 1]} : vector<64x8xf32> to vector<64x1xf32>
    %32 = vector.broadcast %31 : vector<64x1xf32> to vector<64x128xf32>
    %33 = vector.broadcast %30 : vector<1x128xf32> to vector<64x128xf32>
    %34 = arith.mulf %32, %33 : vector<64x128xf32>
    %35 = arith.addf %28, %34 : vector<64x128xf32>
    %c17 = arith.constant 17 : index
    %c0_13 = arith.constant 0 : index
    %36 = vector.load %arg2[%c17, %c0_13] : memref<32x128xf32, #tpu.memory_space<vmem>>, vector<1x128xf32>
    %37 = vector.extract_strided_slice %29 {offsets = [0, 1], sizes = [64, 1], strides = [1, 1]} : vector<64x8xf32> to vector<64x1xf32>
    %38 = vector.broadcast %37 : vector<64x1xf32> to vector<64x128xf32>
    %39 = vector.broadcast %36 : vector<1x128xf32> to vector<64x128xf32>
    %40 = arith.mulf %38, %39 : vector<64x128xf32>
    %41 = arith.addf %35, %40 : vector<64x128xf32>
    %c3 = arith.constant 3 : index
    %c0_14 = arith.constant 0 : index
    %42 = tpu.strided_load %arg1[%c3, %c0_14] {strides = array<i32: 2, 1>} : memref<136x8xf32, #tpu.memory_space<vmem>>, vector<64x8xf32>
    %c24 = arith.constant 24 : index
    %c0_15 = arith.constant 0 : index
    %43 = vector.load %arg2[%c24, %c0_15] : memref<32x128xf32, #tpu.memory_space<vmem>>, vector<1x128xf32>
    %44 = vector.extract_strided_slice %42 {offsets = [0, 0], sizes = [64, 1], strides = [1, 1]} : vector<64x8xf32> to vector<64x1xf32>
    %45 = vector.broadcast %44 : vector<64x1xf32> to vector<64x128xf32>
    %46 = vector.broadcast %43 : vector<1x128xf32> to vector<64x128xf32>
    %47 = arith.mulf %45, %46 : vector<64x128xf32>
    %48 = arith.addf %41, %47 : vector<64x128xf32>
    %c25 = arith.constant 25 : index
    %c0_16 = arith.constant 0 : index
    %49 = vector.load %arg2[%c25, %c0_16] : memref<32x128xf32, #tpu.memory_space<vmem>>, vector<1x128xf32>
    %50 = vector.extract_strided_slice %42 {offsets = [0, 1], sizes = [64, 1], strides = [1, 1]} : vector<64x8xf32> to vector<64x1xf32>
    %51 = vector.broadcast %50 : vector<64x1xf32> to vector<64x128xf32>
    %52 = vector.broadcast %49 : vector<1x128xf32> to vector<64x128xf32>
    %53 = arith.mulf %51, %52 : vector<64x128xf32>
    %54 = arith.addf %48, %53 : vector<64x128xf32>
    %c0_17 = arith.constant 0 : index
    %c0_18 = arith.constant 0 : index
    %55 = vector.load %arg4[%c0_17, %c0_18] : memref<16x128xf32, #tpu.memory_space<vmem>>, vector<1x128xf32>
    %56 = vector.broadcast %55 : vector<1x128xf32> to vector<64x128xf32>
    %57 = arith.addf %54, %56 : vector<64x128xf32>
    %58 = tpu.iota {dimensions = array<i32: 0>} : vector<64x1xi32>
    %c31_i32 = arith.constant 31 : i32
    %59 = vector.broadcast %c31_i32 : i32 to vector<64x1xi32>
    %60 = arith.cmpi slt, %58, %59 : vector<64x1xi32>
    %c32_i32 = arith.constant 32 : i32
    %61 = vector.broadcast %c32_i32 : i32 to vector<64x1xi32>
    %62 = arith.cmpi sge, %58, %61 : vector<64x1xi32>
    %c63_i32 = arith.constant 63 : i32
    %63 = vector.broadcast %c63_i32 : i32 to vector<64x1xi32>
    %64 = arith.cmpi slt, %58, %63 : vector<64x1xi32>
    %65 = arith.andi %62, %64 : vector<64x1xi1>
    %66 = arith.ori %60, %65 : vector<64x1xi1>
    %cst_19 = arith.constant 0.000000e+00 : f32
    %67 = vector.shape_cast %66 : vector<64x1xi1> to vector<64x1xi1>
    %68 = vector.broadcast %67 : vector<64x1xi1> to vector<64x128xi1>
    %69 = vector.broadcast %cst_19 : f32 to vector<64x128xf32>
    %70 = arith.select %68, %57, %69 : vector<64x128xi1>, vector<64x128xf32>
    %cst_20 = arith.constant 0.000000e+00 : f32
    %71 = vector.broadcast %cst_20 : f32 to vector<64x128xf32>
    %72 = arith.cmpf oge, %70, %71 : vector<64x128xf32>
    %cst_21 = arith.constant 2.000000e-01 : f32
    %73 = vector.broadcast %cst_21 : f32 to vector<64x128xf32>
    %74 = arith.mulf %73, %70 : vector<64x128xf32>
    %75 = arith.select %72, %70, %74 : vector<64x128xi1>, vector<64x128xf32>
    %cst_22 = arith.constant 0.000000e+00 : f32
    %76 = vector.shape_cast %66 : vector<64x1xi1> to vector<64x1xi1>
    %77 = vector.broadcast %76 : vector<64x1xi1> to vector<64x128xi1>
    %78 = vector.broadcast %cst_22 : f32 to vector<64x128xf32>
    %79 = arith.select %77, %75, %78 : vector<64x128xi1>, vector<64x128xf32>
    %c0_23 = arith.constant 0 : index
    %c0_24 = arith.constant 0 : index
    %80 = vector.load %arg6[%c0_23, %c0_24] : memref<72x128xf32, #tpu.memory_space<vmem>>, vector<64x128xf32>
    tpu.vector_store %arg6[%c0_23, %c0_24], %79 {strides = array<i32>} : memref<72x128xf32, #tpu.memory_space<vmem>>, vector<64x128xf32>,
    %c0_25 = arith.constant 0 : index
    %c0_26 = arith.constant 0 : index
    %81 = tpu.strided_load %arg6[%c0_25, %c0_26] {strides = array<i32: 2, 1>} : memref<72x128xf32, #tpu.memory_space<vmem>>, vector<32x128xf32>
    %82 = arith.truncf %81 : vector<32x128xf32> to vector<32x128xbf16>
    %c0_27 = arith.constant 0 : index
    %c0_28 = arith.constant 0 : index
    %c0_29 = arith.constant 0 : index
    %83 = vector.load %arg3[%c0_27, %c0_28, %c0_29] : memref<12x128x128xbf16, #tpu.memory_space<vmem>>, vector<1x128x128xbf16>
    %84 = vector.shape_cast %83 : vector<1x128x128xbf16> to vector<128x128xbf16>
    %cst_30 = arith.constant dense<0.000000e+00> : vector<32x128xf32>
    %85 = tpu.matmul %82, %84, %cst_30 {dimension_numbers = #tpu.dot_dimension_numbers<[1], [0], [0], [1], [0, 0, 1, 1], [], []>} : vector<32x128xbf16>, vector<128x128xbf16>, vector<32x128xf32> -> vector<32x128xf32>
    %c1_31 = arith.constant 1 : index
    %c0_32 = arith.constant 0 : index
    %86 = tpu.strided_load %arg6[%c1_31, %c0_32] {strides = array<i32: 2, 1>} : memref<72x128xf32, #tpu.memory_space<vmem>>, vector<32x128xf32>
    %87 = arith.truncf %86 : vector<32x128xf32> to vector<32x128xbf16>
    %c1_33 = arith.constant 1 : index
    %c0_34 = arith.constant 0 : index
    %c0_35 = arith.constant 0 : index
    %88 = vector.load %arg3[%c1_33, %c0_34, %c0_35] : memref<12x128x128xbf16, #tpu.memory_space<vmem>>, vector<1x128x128xbf16>
    %89 = vector.shape_cast %88 : vector<1x128x128xbf16> to vector<128x128xbf16>
    %cst_36 = arith.constant dense<0.000000e+00> : vector<32x128xf32>
    %90 = tpu.matmul %87, %89, %cst_36 {dimension_numbers = #tpu.dot_dimension_numbers<[1], [0], [0], [1], [0, 0, 1, 1], [], []>} : vector<32x128xbf16>, vector<128x128xbf16>, vector<32x128xf32> -> vector<32x128xf32>
    %91 = arith.addf %85, %90 : vector<32x128xf32>
    %c2_37 = arith.constant 2 : index
    %c0_38 = arith.constant 0 : index
    %92 = tpu.strided_load %arg6[%c2_37, %c0_38] {strides = array<i32: 2, 1>} : memref<72x128xf32, #tpu.memory_space<vmem>>, vector<32x128xf32>
    %93 = arith.truncf %92 : vector<32x128xf32> to vector<32x128xbf16>
    %c2_39 = arith.constant 2 : index
    %c0_40 = arith.constant 0 : index
    %c0_41 = arith.constant 0 : index
    %94 = vector.load %arg3[%c2_39, %c0_40, %c0_41] : memref<12x128x128xbf16, #tpu.memory_space<vmem>>, vector<1x128x128xbf16>
    %95 = vector.shape_cast %94 : vector<1x128x128xbf16> to vector<128x128xbf16>
    %cst_42 = arith.constant dense<0.000000e+00> : vector<32x128xf32>
    %96 = tpu.matmul %93, %95, %cst_42 {dimension_numbers = #tpu.dot_dimension_numbers<[1], [0], [0], [1], [0, 0, 1, 1], [], []>} : vector<32x128xbf16>, vector<128x128xbf16>, vector<32x128xf32> -> vector<32x128xf32>
    %97 = arith.addf %91, %96 : vector<32x128xf32>
    %c3_43 = arith.constant 3 : index
    %c0_44 = arith.constant 0 : index
    %98 = tpu.strided_load %arg6[%c3_43, %c0_44] {strides = array<i32: 2, 1>} : memref<72x128xf32, #tpu.memory_space<vmem>>, vector<32x128xf32>
    %99 = arith.truncf %98 : vector<32x128xf32> to vector<32x128xbf16>
    %c3_45 = arith.constant 3 : index
    %c0_46 = arith.constant 0 : index
    %c0_47 = arith.constant 0 : index
    %100 = vector.load %arg3[%c3_45, %c0_46, %c0_47] : memref<12x128x128xbf16, #tpu.memory_space<vmem>>, vector<1x128x128xbf16>
    %101 = vector.shape_cast %100 : vector<1x128x128xbf16> to vector<128x128xbf16>
    %cst_48 = arith.constant dense<0.000000e+00> : vector<32x128xf32>
    %102 = tpu.matmul %99, %101, %cst_48 {dimension_numbers = #tpu.dot_dimension_numbers<[1], [0], [0], [1], [0, 0, 1, 1], [], []>} : vector<32x128xbf16>, vector<128x128xbf16>, vector<32x128xf32> -> vector<32x128xf32>
    %103 = arith.addf %97, %102 : vector<32x128xf32>
    %104 = tpu.iota {dimensions = array<i32: 0>} : vector<32x1xi32>
    %c14_i32 = arith.constant 14 : i32
    %105 = vector.broadcast %c14_i32 : i32 to vector<32x1xi32>
    %106 = arith.cmpi slt, %104, %105 : vector<32x1xi32>
    %c16_i32 = arith.constant 16 : i32
    %107 = vector.broadcast %c16_i32 : i32 to vector<32x1xi32>
    %108 = arith.cmpi sge, %104, %107 : vector<32x1xi32>
    %c30_i32 = arith.constant 30 : i32
    %109 = vector.broadcast %c30_i32 : i32 to vector<32x1xi32>
    %110 = arith.cmpi slt, %104, %109 : vector<32x1xi32>
    %111 = arith.andi %108, %110 : vector<32x1xi1>
    %112 = arith.ori %106, %111 : vector<32x1xi1>
    %cst_49 = arith.constant 0.000000e+00 : f32
    %113 = vector.shape_cast %112 : vector<32x1xi1> to vector<32x1xi1>
    %114 = vector.broadcast %113 : vector<32x1xi1> to vector<32x128xi1>
    %115 = vector.broadcast %cst_49 : f32 to vector<32x128xf32>
    %116 = arith.select %114, %103, %115 : vector<32x128xi1>, vector<32x128xf32>
    %c4 = arith.constant 4 : index
    %c0_50 = arith.constant 0 : index
    %117 = vector.load %arg4[%c4, %c0_50] : memref<16x128xf32, #tpu.memory_space<vmem>>, vector<1x128xf32>
    %c5 = arith.constant 5 : index
    %c0_51 = arith.constant 0 : index
    %118 = vector.load %arg4[%c5, %c0_51] : memref<16x128xf32, #tpu.memory_space<vmem>>, vector<1x128xf32>
    %cst_52 = arith.constant dense<0.000000e+00> : vector<128xf32>
    %119 = vector.multi_reduction <add>, %116, %cst_52 [0] : vector<32x128xf32> to vector<128xf32>
    %120 = vector.shape_cast %119 : vector<128xf32> to vector<1x128xf32>
    %cst_53 = arith.constant 0.0357142873 : f32
    %121 = vector.broadcast %cst_53 : f32 to vector<1x128xf32>
    %122 = arith.mulf %120, %121 : vector<1x128xf32>
    %123 = vector.broadcast %122 : vector<1x128xf32> to vector<32x128xf32>
    %124 = arith.subf %116, %123 : vector<32x128xf32>
    %cst_54 = arith.constant 0.000000e+00 : f32
    %125 = vector.shape_cast %112 : vector<32x1xi1> to vector<32x1xi1>
    %126 = vector.broadcast %125 : vector<32x1xi1> to vector<32x128xi1>
    %127 = vector.broadcast %cst_54 : f32 to vector<32x128xf32>
    %128 = arith.select %126, %124, %127 : vector<32x128xi1>, vector<32x128xf32>
    %129 = arith.mulf %128, %128 : vector<32x128xf32>
    %cst_55 = arith.constant dense<0.000000e+00> : vector<128xf32>
    %130 = vector.multi_reduction <add>, %129, %cst_55 [0] : vector<32x128xf32> to vector<128xf32>
    %131 = vector.shape_cast %130 : vector<128xf32> to vector<1x128xf32>
    %cst_56 = arith.constant 0.0357142873 : f32
    %132 = vector.broadcast %cst_56 : f32 to vector<1x128xf32>
    %133 = arith.mulf %131, %132 : vector<1x128xf32>
    %cst_57 = arith.constant 9.99999974E-6 : f32
    %134 = vector.broadcast %cst_57 : f32 to vector<1x128xf32>
    %135 = arith.addf %133, %134 : vector<1x128xf32>
    %136 = math.rsqrt %135 : vector<1x128xf32>
    %137 = arith.mulf %136, %117 : vector<1x128xf32>
    %138 = vector.broadcast %137 : vector<1x128xf32> to vector<32x128xf32>
    %139 = arith.mulf %128, %138 : vector<32x128xf32>
    %140 = vector.broadcast %118 : vector<1x128xf32> to vector<32x128xf32>
    %141 = arith.addf %139, %140 : vector<32x128xf32>
    %cst_58 = arith.constant 0.000000e+00 : f32
    %142 = vector.broadcast %cst_58 : f32 to vector<32x128xf32>
    %143 = arith.cmpf oge, %141, %142 : vector<32x128xf32>
    %cst_59 = arith.constant 2.000000e-01 : f32
    %144 = vector.broadcast %cst_59 : f32 to vector<32x128xf32>
    %145 = arith.mulf %144, %141 : vector<32x128xf32>
    %146 = arith.select %143, %141, %145 : vector<32x128xi1>, vector<32x128xf32>
    %cst_60 = arith.constant 0.000000e+00 : f32
    %147 = vector.shape_cast %112 : vector<32x1xi1> to vector<32x1xi1>
    %148 = vector.broadcast %147 : vector<32x1xi1> to vector<32x128xi1>
    %149 = vector.broadcast %cst_60 : f32 to vector<32x128xf32>
    %150 = arith.select %148, %146, %149 : vector<32x128xi1>, vector<32x128xf32>
    %151 = arith.truncf %150 : vector<32x128xf32> to vector<32x128xbf16>
    %c0_61 = arith.constant 0 : index
    %c0_62 = arith.constant 0 : index
    %152 = vector.load %arg7[%c0_61, %c0_62] : memref<40x128xbf16, #tpu.memory_space<vmem>>, vector<32x128xbf16>
    tpu.vector_store %arg7[%c0_61, %c0_62], %151 {strides = array<i32>} : memref<40x128xbf16, #tpu.memory_space<vmem>>, vector<32x128xbf16>,
    %c0_63 = arith.constant 0 : index
    %c0_64 = arith.constant 0 : index
    %153 = vector.load %arg7[%c0_63, %c0_64] : memref<40x128xbf16, #tpu.memory_space<vmem>>, vector<32x128xbf16>
    %c4_65 = arith.constant 4 : index
    %c0_66 = arith.constant 0 : index
    %c0_67 = arith.constant 0 : index
    %154 = vector.load %arg3[%c4_65, %c0_66, %c0_67] : memref<12x128x128xbf16, #tpu.memory_space<vmem>>, vector<1x128x128xbf16>
    %155 = vector.shape_cast %154 : vector<1x128x128xbf16> to vector<128x128xbf16>
    %cst_68 = arith.constant dense<0.000000e+00> : vector<32x128xf32>
    %156 = tpu.matmul %153, %155, %cst_68 {dimension_numbers = #tpu.dot_dimension_numbers<[1], [0], [0], [1], [0, 0, 1, 1], [], []>} : vector<32x128xbf16>, vector<128x128xbf16>, vector<32x128xf32> -> vector<32x128xf32>
    %c1_69 = arith.constant 1 : index
    %c0_70 = arith.constant 0 : index
    %157 = vector.load %arg7[%c1_69, %c0_70] : memref<40x128xbf16, #tpu.memory_space<vmem>>, vector<32x128xbf16>
    %c5_71 = arith.constant 5 : index
    %c0_72 = arith.constant 0 : index
    %c0_73 = arith.constant 0 : index
    %158 = vector.load %arg3[%c5_71, %c0_72, %c0_73] : memref<12x128x128xbf16, #tpu.memory_space<vmem>>, vector<1x128x128xbf16>
    %159 = vector.shape_cast %158 : vector<1x128x128xbf16> to vector<128x128xbf16>
    %cst_74 = arith.constant dense<0.000000e+00> : vector<32x128xf32>
    %160 = tpu.matmul %157, %159, %cst_74 {dimension_numbers = #tpu.dot_dimension_numbers<[1], [0], [0], [1], [0, 0, 1, 1], [], []>} : vector<32x128xbf16>, vector<128x128xbf16>, vector<32x128xf32> -> vector<32x128xf32>
    %161 = arith.addf %156, %160 : vector<32x128xf32>
    %c2_75 = arith.constant 2 : index
    %c0_76 = arith.constant 0 : index
    %162 = vector.load %arg7[%c2_75, %c0_76] : memref<40x128xbf16, #tpu.memory_space<vmem>>, vector<32x128xbf16>
    %c6 = arith.constant 6 : index
    %c0_77 = arith.constant 0 : index
    %c0_78 = arith.constant 0 : index
    %163 = vector.load %arg3[%c6, %c0_77, %c0_78] : memref<12x128x128xbf16, #tpu.memory_space<vmem>>, vector<1x128x128xbf16>
    %164 = vector.shape_cast %163 : vector<1x128x128xbf16> to vector<128x128xbf16>
    %cst_79 = arith.constant dense<0.000000e+00> : vector<32x128xf32>
    %165 = tpu.matmul %162, %164, %cst_79 {dimension_numbers = #tpu.dot_dimension_numbers<[1], [0], [0], [1], [0, 0, 1, 1], [], []>} : vector<32x128xbf16>, vector<128x128xbf16>, vector<32x128xf32> -> vector<32x128xf32>
    %166 = arith.addf %161, %165 : vector<32x128xf32>
    %c3_80 = arith.constant 3 : index
    %c0_81 = arith.constant 0 : index
    %167 = vector.load %arg7[%c3_80, %c0_81] : memref<40x128xbf16, #tpu.memory_space<vmem>>, vector<32x128xbf16>
    %c7 = arith.constant 7 : index
    %c0_82 = arith.constant 0 : index
    %c0_83 = arith.constant 0 : index
    %168 = vector.load %arg3[%c7, %c0_82, %c0_83] : memref<12x128x128xbf16, #tpu.memory_space<vmem>>, vector<1x128x128xbf16>
    %169 = vector.shape_cast %168 : vector<1x128x128xbf16> to vector<128x128xbf16>
    %cst_84 = arith.constant dense<0.000000e+00> : vector<32x128xf32>
    %170 = tpu.matmul %167, %169, %cst_84 {dimension_numbers = #tpu.dot_dimension_numbers<[1], [0], [0], [1], [0, 0, 1, 1], [], []>} : vector<32x128xbf16>, vector<128x128xbf16>, vector<32x128xf32> -> vector<32x128xf32>
    %171 = arith.addf %166, %170 : vector<32x128xf32>
    %172 = tpu.iota {dimensions = array<i32: 0>} : vector<32x1xi32>
    %c11_i32 = arith.constant 11 : i32
    %173 = vector.broadcast %c11_i32 : i32 to vector<32x1xi32>
    %174 = arith.cmpi slt, %172, %173 : vector<32x1xi32>
    %c16_i32_85 = arith.constant 16 : i32
    %175 = vector.broadcast %c16_i32_85 : i32 to vector<32x1xi32>
    %176 = arith.cmpi sge, %172, %175 : vector<32x1xi32>
    %c27_i32 = arith.constant 27 : i32
    %177 = vector.broadcast %c27_i32 : i32 to vector<32x1xi32>
    %178 = arith.cmpi slt, %172, %177 : vector<32x1xi32>
    %179 = arith.andi %176, %178 : vector<32x1xi1>
    %180 = arith.ori %174, %179 : vector<32x1xi1>
    %cst_86 = arith.constant 0.000000e+00 : f32
    %181 = vector.shape_cast %180 : vector<32x1xi1> to vector<32x1xi1>
    %182 = vector.broadcast %181 : vector<32x1xi1> to vector<32x128xi1>
    %183 = vector.broadcast %cst_86 : f32 to vector<32x128xf32>
    %184 = arith.select %182, %171, %183 : vector<32x128xi1>, vector<32x128xf32>
    %c7_87 = arith.constant 7 : index
    %c0_88 = arith.constant 0 : index
    %185 = vector.load %arg4[%c7_87, %c0_88] : memref<16x128xf32, #tpu.memory_space<vmem>>, vector<1x128xf32>
    %c8_89 = arith.constant 8 : index
    %c0_90 = arith.constant 0 : index
    %186 = vector.load %arg4[%c8_89, %c0_90] : memref<16x128xf32, #tpu.memory_space<vmem>>, vector<1x128xf32>
    %cst_91 = arith.constant dense<0.000000e+00> : vector<128xf32>
    %187 = vector.multi_reduction <add>, %184, %cst_91 [0] : vector<32x128xf32> to vector<128xf32>
    %188 = vector.shape_cast %187 : vector<128xf32> to vector<1x128xf32>
    %cst_92 = arith.constant 0.0454545468 : f32
    %189 = vector.broadcast %cst_92 : f32 to vector<1x128xf32>
    %190 = arith.mulf %188, %189 : vector<1x128xf32>
    %191 = vector.broadcast %190 : vector<1x128xf32> to vector<32x128xf32>
    %192 = arith.subf %184, %191 : vector<32x128xf32>
    %cst_93 = arith.constant 0.000000e+00 : f32
    %193 = vector.shape_cast %180 : vector<32x1xi1> to vector<32x1xi1>
    %194 = vector.broadcast %193 : vector<32x1xi1> to vector<32x128xi1>
    %195 = vector.broadcast %cst_93 : f32 to vector<32x128xf32>
    %196 = arith.select %194, %192, %195 : vector<32x128xi1>, vector<32x128xf32>
    %197 = arith.mulf %196, %196 : vector<32x128xf32>
    %cst_94 = arith.constant dense<0.000000e+00> : vector<128xf32>
    %198 = vector.multi_reduction <add>, %197, %cst_94 [0] : vector<32x128xf32> to vector<128xf32>
    %199 = vector.shape_cast %198 : vector<128xf32> to vector<1x128xf32>
    %cst_95 = arith.constant 0.0454545468 : f32
    %200 = vector.broadcast %cst_95 : f32 to vector<1x128xf32>
    %201 = arith.mulf %199, %200 : vector<1x128xf32>
    %cst_96 = arith.constant 9.99999974E-6 : f32
    %202 = vector.broadcast %cst_96 : f32 to vector<1x128xf32>
    %203 = arith.addf %201, %202 : vector<1x128xf32>
    %204 = math.rsqrt %203 : vector<1x128xf32>
    %205 = arith.mulf %204, %185 : vector<1x128xf32>
    %206 = vector.broadcast %205 : vector<1x128xf32> to vector<32x128xf32>
    %207 = arith.mulf %196, %206 : vector<32x128xf32>
    %208 = vector.broadcast %186 : vector<1x128xf32> to vector<32x128xf32>
    %209 = arith.addf %207, %208 : vector<32x128xf32>
    %cst_97 = arith.constant 0.000000e+00 : f32
    %210 = vector.broadcast %cst_97 : f32 to vector<32x128xf32>
    %211 = arith.cmpf oge, %209, %210 : vector<32x128xf32>
    %cst_98 = arith.constant 2.000000e-01 : f32
    %212 = vector.broadcast %cst_98 : f32 to vector<32x128xf32>
    %213 = arith.mulf %212, %209 : vector<32x128xf32>
    %214 = arith.select %211, %209, %213 : vector<32x128xi1>, vector<32x128xf32>
    %cst_99 = arith.constant 0.000000e+00 : f32
    %215 = vector.shape_cast %180 : vector<32x1xi1> to vector<32x1xi1>
    %216 = vector.broadcast %215 : vector<32x1xi1> to vector<32x128xi1>
    %217 = vector.broadcast %cst_99 : f32 to vector<32x128xf32>
    %218 = arith.select %216, %214, %217 : vector<32x128xi1>, vector<32x128xf32>
    %c0_100 = arith.constant 0 : index
    %c0_101 = arith.constant 0 : index
    %219 = vector.load %arg6[%c0_100, %c0_101] : memref<72x128xf32, #tpu.memory_space<vmem>>, vector<32x128xf32>
    tpu.vector_store %arg6[%c0_100, %c0_101], %218 {strides = array<i32>} : memref<72x128xf32, #tpu.memory_space<vmem>>, vector<32x128xf32>,
    %c0_102 = arith.constant 0 : index
    %c0_103 = arith.constant 0 : index
    %220 = vector.load %arg6[%c0_102, %c0_103] : memref<72x128xf32, #tpu.memory_space<vmem>>, vector<32x128xf32>
    %221 = arith.truncf %220 : vector<32x128xf32> to vector<32x128xbf16>
    %c8_104 = arith.constant 8 : index
    %c0_105 = arith.constant 0 : index
    %c0_106 = arith.constant 0 : index
    %222 = vector.load %arg3[%c8_104, %c0_105, %c0_106] : memref<12x128x128xbf16, #tpu.memory_space<vmem>>, vector<1x128x128xbf16>
    %223 = vector.shape_cast %222 : vector<1x128x128xbf16> to vector<128x128xbf16>
    %cst_107 = arith.constant dense<0.000000e+00> : vector<32x128xf32>
    %224 = tpu.matmul %221, %223, %cst_107 {dimension_numbers = #tpu.dot_dimension_numbers<[1], [0], [0], [1], [0, 0, 1, 1], [], []>} : vector<32x128xbf16>, vector<128x128xbf16>, vector<32x128xf32> -> vector<32x128xf32>
    %c1_108 = arith.constant 1 : index
    %c0_109 = arith.constant 0 : index
    %225 = vector.load %arg6[%c1_108, %c0_109] : memref<72x128xf32, #tpu.memory_space<vmem>>, vector<32x128xf32>
    %226 = arith.truncf %225 : vector<32x128xf32> to vector<32x128xbf16>
    %c9_110 = arith.constant 9 : index
    %c0_111 = arith.constant 0 : index
    %c0_112 = arith.constant 0 : index
    %227 = vector.load %arg3[%c9_110, %c0_111, %c0_112] : memref<12x128x128xbf16, #tpu.memory_space<vmem>>, vector<1x128x128xbf16>
    %228 = vector.shape_cast %227 : vector<1x128x128xbf16> to vector<128x128xbf16>
    %cst_113 = arith.constant dense<0.000000e+00> : vector<32x128xf32>
    %229 = tpu.matmul %226, %228, %cst_113 {dimension_numbers = #tpu.dot_dimension_numbers<[1], [0], [0], [1], [0, 0, 1, 1], [], []>} : vector<32x128xbf16>, vector<128x128xbf16>, vector<32x128xf32> -> vector<32x128xf32>
    %230 = arith.addf %224, %229 : vector<32x128xf32>
    %c2_114 = arith.constant 2 : index
    %c0_115 = arith.constant 0 : index
    %231 = vector.load %arg6[%c2_114, %c0_115] : memref<72x128xf32, #tpu.memory_space<vmem>>, vector<32x128xf32>
    %232 = arith.truncf %231 : vector<32x128xf32> to vector<32x128xbf16>
    %c10 = arith.constant 10 : index
    %c0_116 = arith.constant 0 : index
    %c0_117 = arith.constant 0 : index
    %233 = vector.load %arg3[%c10, %c0_116, %c0_117] : memref<12x128x128xbf16, #tpu.memory_space<vmem>>, vector<1x128x128xbf16>
    %234 = vector.shape_cast %233 : vector<1x128x128xbf16> to vector<128x128xbf16>
    %cst_118 = arith.constant dense<0.000000e+00> : vector<32x128xf32>
    %235 = tpu.matmul %232, %234, %cst_118 {dimension_numbers = #tpu.dot_dimension_numbers<[1], [0], [0], [1], [0, 0, 1, 1], [], []>} : vector<32x128xbf16>, vector<128x128xbf16>, vector<32x128xf32> -> vector<32x128xf32>
    %236 = arith.addf %230, %235 : vector<32x128xf32>
    %c3_119 = arith.constant 3 : index
    %c0_120 = arith.constant 0 : index
    %237 = vector.load %arg6[%c3_119, %c0_120] : memref<72x128xf32, #tpu.memory_space<vmem>>, vector<32x128xf32>
    %238 = arith.truncf %237 : vector<32x128xf32> to vector<32x128xbf16>
    %c11 = arith.constant 11 : index
    %c0_121 = arith.constant 0 : index
    %c0_122 = arith.constant 0 : index
    %239 = vector.load %arg3[%c11, %c0_121, %c0_122] : memref<12x128x128xbf16, #tpu.memory_space<vmem>>, vector<1x128x128xbf16>
    %240 = vector.shape_cast %239 : vector<1x128x128xbf16> to vector<128x128xbf16>
    %cst_123 = arith.constant dense<0.000000e+00> : vector<32x128xf32>
    %241 = tpu.matmul %238, %240, %cst_123 {dimension_numbers = #tpu.dot_dimension_numbers<[1], [0], [0], [1], [0, 0, 1, 1], [], []>} : vector<32x128xbf16>, vector<128x128xbf16>, vector<32x128xf32> -> vector<32x128xf32>
    %242 = arith.addf %236, %241 : vector<32x128xf32>
    %c9_124 = arith.constant 9 : index
    %c0_125 = arith.constant 0 : index
    %243 = vector.load %arg4[%c9_124, %c0_125] : memref<16x128xf32, #tpu.memory_space<vmem>>, vector<1x128xf32>
    %244 = vector.broadcast %243 : vector<1x128xf32> to vector<32x128xf32>
    %245 = arith.addf %242, %244 : vector<32x128xf32>
    %246 = tpu.iota {dimensions = array<i32: 0>} : vector<32x1xi32>
    %c8_i32 = arith.constant 8 : i32
    %247 = vector.broadcast %c8_i32 : i32 to vector<32x1xi32>
    %248 = arith.cmpi slt, %246, %247 : vector<32x1xi32>
    %c16_i32_126 = arith.constant 16 : i32
    %249 = vector.broadcast %c16_i32_126 : i32 to vector<32x1xi32>
    %250 = arith.cmpi sge, %246, %249 : vector<32x1xi32>
    %c24_i32 = arith.constant 24 : i32
    %251 = vector.broadcast %c24_i32 : i32 to vector<32x1xi32>
    %252 = arith.cmpi slt, %246, %251 : vector<32x1xi32>
    %253 = arith.andi %250, %252 : vector<32x1xi1>
    %254 = arith.ori %248, %253 : vector<32x1xi1>
    %cst_127 = arith.constant 0.000000e+00 : f32
    %255 = vector.shape_cast %254 : vector<32x1xi1> to vector<32x1xi1>
    %256 = vector.broadcast %255 : vector<32x1xi1> to vector<32x128xi1>
    %257 = vector.broadcast %cst_127 : f32 to vector<32x128xf32>
    %258 = arith.select %256, %245, %257 : vector<32x128xi1>, vector<32x128xf32>
    %cst_128 = arith.constant 0.000000e+00 : f32
    %259 = vector.shape_cast %254 : vector<32x1xi1> to vector<32x1xi1>
    %260 = vector.broadcast %259 : vector<32x1xi1> to vector<32x128xi1>
    %261 = vector.broadcast %cst_128 : f32 to vector<32x128xf32>
    %262 = arith.select %260, %258, %261 : vector<32x128xi1>, vector<32x128xf32>
    %c0_129 = arith.constant 0 : index
    %c0_130 = arith.constant 0 : index
    %263 = vector.load %arg5[%c0_129, %c0_130] : memref<32x128xf32, #tpu.memory_space<vmem>>, vector<32x128xf32>
    tpu.vector_store %arg5[%c0_129, %c0_130], %262 {strides = array<i32>} : memref<32x128xf32, #tpu.memory_space<vmem>>, vector<32x128xf32>,
    return
  }
  func.func @transform_0(%arg0: i32) -> (i32, i32) {
    %c0_i32 = arith.constant 0 : i32
    %c0_i32_0 = arith.constant 0 : i32
    %c0_i32_1 = arith.constant 0 : i32
    return %c0_i32, %c0_i32_0 : i32, i32
  }
  func.func @transform_1(%arg0: i32) -> (i32, i32) {
    %c0_i32 = arith.constant 0 : i32
    %c0_i32_0 = arith.constant 0 : i32
    %c0_i32_1 = arith.constant 0 : i32
    return %c0_i32, %c0_i32_0 : i32, i32
  }
  func.func @transform_2(%arg0: i32) -> (i32, i32, i32) {
    %c0_i32 = arith.constant 0 : i32
    %c0_i32_0 = arith.constant 0 : i32
    %c0_i32_1 = arith.constant 0 : i32
    %c0_i32_2 = arith.constant 0 : i32
    return %c0_i32, %c0_i32_0, %c0_i32_1 : i32, i32, i32
  }
  func.func @transform_3(%arg0: i32) -> (i32, i32) {
    %c0_i32 = arith.constant 0 : i32
    %c0_i32_0 = arith.constant 0 : i32
    %c0_i32_1 = arith.constant 0 : i32
    return %c0_i32, %c0_i32_0 : i32, i32
  }
  func.func @transform_4(%arg0: i32) -> (i32, i32) {
    %c0_i32 = arith.constant 0 : i32
    %c0_i32_0 = arith.constant 0 : i32
    %c0_i32_1 = arith.constant 0 : i32
    return %c0_i32, %c0_i32_0 : i32, i32
  }
}

</mosaic_0001>

<llo_original>
// kernel: _lambda_.1
$region0: #{_lambda_.1}
  #allocation0 [shape = 'u32[]', space=smem, size = 0x4, offset = 0x4, fixed_abs, tag = 'smem constant byte address 0x4 - core index']
  #allocation1 [shape = 'u32[144,128]{1,0:T(1,128)}', space=vmem, size = 0x12000, scoped, tag = 'internal scratch']
  #allocation2 [shape = 'f32[72,128]{1,0:T(8,128)}', space=vmem, size = 0x9000, scoped, tag = 'scratch operand']
  #allocation3 [shape = 'bf16[40,128]{1,0:T(8,128)(2,1)}', space=vmem, size = 0x2800, scoped, tag = 'scratch operand']
  %s0 = inlined_call_operand.vmem [shape: f32[136,8], index: 0, kind: input, shape index: {}]
  %s1 = inlined_call_operand.vmem [shape: f32[32,128], index: 1, kind: input, shape index: {}]
  %s2 = inlined_call_operand.hbm [shape: bf16[12,128,128], index: 2, kind: input, shape index: {}]
  %s3 = inlined_call_operand.vmem [shape: f32[16,128], index: 3, kind: input, shape index: {}]
  %s4 = inlined_call_operand.vmem [shape: f32[32,128], index: 4, kind: output, shape index: {}]
  %s5 = sld [smem:[#allocation0]]
  $region30: #{_lambda_.1} parent=0
    _
  %s7 = ssub.s32 1, %s5
  %s8 = scalar_select 0, %s7, %s5
  $region1: #{_lambda_.1} parent=0
    #allocation4 [shape = 'u8[393216]{0}', space=vmem, size = 0x60000, scoped, tag = 'input window, operand 2, single buffered']
    #allocation5 [shape = 's32[1]{0}', space=sflag, size = 0x4, scoped, tag = 'scoped memory for _lambda_.1']
    %9 = vsyncpa [#allocation5], 0
    // Predicated region
    $region2: #{_lambda_.1} parent=1 // pred_check
      _
    $region3: #{_lambda_.1} parent=1 // pred_check_branch
      %11 = sbr.rel (0) target = $region5
    $region4: #{_lambda_.1} parent=1 // pred_region
      _
    $region5: #{_lambda_.1} parent=1 // pred_fallthru
      _
    // Predicated region
    $region6: #{_lambda_.1} parent=1 // pred_check
      _
    $region7: #{_lambda_.1} parent=1 // pred_check_branch
      %13 = sbr.rel (0) target = $region9
    $region8: #{_lambda_.1} parent=1 // pred_region
      _
    $region9: #{_lambda_.1} parent=1 // pred_fallthru
      _
    // Predicated region
    $region10: #{_lambda_.1} parent=1 // pred_check
      _
    $region11: #{_lambda_.1} parent=1 // pred_check_branch
      %15 = sbr.rel (0) target = $region13
    $region12: #{_lambda_.1} parent=1 // pred_region
      %s17 = ssub.s32 12288, 12288
      %18 = vsyncadd [#allocation5], %s17
      %s19 = sshll.u32 [#allocation4], 4
      %s20 = int_to_ptr.vmem [resolvable:$true] %s19
      %25 = dma.hbm_to_vmem [thread:$0]  %s2, 12288, %s20, [#allocation5], 64, 64, 4
    $region13: #{_lambda_.1} parent=1 // pred_fallthru
      _
    // Predicated region
    $region14: #{_lambda_.1} parent=1 // pred_check
      _
    $region15: #{_lambda_.1} parent=1 // pred_check_branch
      %27 = sbr.rel (0) target = $region17
    $region16: #{_lambda_.1} parent=1 // pred_region
      _
    $region17: #{_lambda_.1} parent=1 // pred_fallthru
      _
    // Predicated region
    $region18: #{_lambda_.1} parent=1 // pred_check
      _
    $region19: #{_lambda_.1} parent=1 // pred_check_branch
      %29 = sbr.rel (0) target = $region21
    $region20: #{_lambda_.1} parent=1 // pred_region
      %30 = dma.done [#allocation5], 12288
    $region21: #{_lambda_.1} parent=1 // pred_fallthru
      _
    %32 = vst [vmem:[#allocation2 + $0x40] sm:$0xff] 0.0
    %33 = vst [vmem:[#allocation3 + $0x10] sm:$0xf] 0
    %v34 = vld [vmem:[%s0] ss:$2 sm:$0xff]
    %s35 = scalar_lea.vmem %s0, 16
    %v36 = vld [vmem:[%s35] ss:$2 sm:$0xff]
    %s37 = scalar_lea.vmem %s0, 32
    %v38 = vld [vmem:[%s37] ss:$2 sm:$0xff]
    %s39 = scalar_lea.vmem %s0, 48
    %v40 = vld [vmem:[%s39] ss:$2 sm:$0xff]
    %s41 = scalar_lea.vmem %s0, 64
    %v42 = vld [vmem:[%s41] ss:$2 sm:$0xff]
    %s43 = scalar_lea.vmem %s0, 80
    %v44 = vld [vmem:[%s43] ss:$2 sm:$0xff]
    %s45 = scalar_lea.vmem %s0, 96
    %v46 = vld [vmem:[%s45] ss:$2 sm:$0xff]
    %s47 = scalar_lea.vmem %s0, 112
    %v48 = vld [vmem:[%s47] ss:$2 sm:$0xff]
    %v49 = vld [vmem:[%s1] sm:$0x1]
    %51 = vset.pattern.permute.xlu0 0
    %52 = vperm.xlu0 %51, %v34
    %v53 = vpop.permute.xlu0 %52
    %56 = vset.pattern.permute.xlu0 0
    %57 = vperm.xlu0 %56, %v36
    %v58 = vpop.permute.xlu0 %57
    %61 = vset.pattern.permute.xlu0 0
    %62 = vperm.xlu0 %61, %v38
    %v63 = vpop.permute.xlu0 %62
    %66 = vset.pattern.permute.xlu0 0
    %67 = vperm.xlu0 %66, %v40
    %v68 = vpop.permute.xlu0 %67
    %71 = vset.pattern.permute.xlu0 0
    %72 = vperm.xlu0 %71, %v42
    %v73 = vpop.permute.xlu0 %72
    %76 = vset.pattern.permute.xlu0 0
    %77 = vperm.xlu0 %76, %v44
    %v78 = vpop.permute.xlu0 %77
    %81 = vset.pattern.permute.xlu0 0
    %82 = vperm.xlu0 %81, %v46
    %v83 = vpop.permute.xlu0 %82
    %86 = vset.pattern.permute.xlu0 0
    %87 = vperm.xlu0 %86, %v48
    %v88 = vpop.permute.xlu0 %87
    %v90 = vlaneseq
    %v91 = vshrl.u32 %v90, 7
    %v92 = vsub.s32 0, %v91
    %v93 = vrot.slane %v49, %v92
    %v94 = vmul.f32 %v53, %v93
    %v95 = vmul.f32 %v58, %v93
    %v96 = vmul.f32 %v63, %v93
    %v97 = vmul.f32 %v68, %v93
    %v98 = vmul.f32 %v73, %v93
    %v99 = vmul.f32 %v78, %v93
    %v100 = vmul.f32 %v83, %v93
    %v101 = vmul.f32 %v88, %v93
    %v102 = vld [vmem:[%s1 + $0x1] sm:$0x1]
    %103 = vset.pattern.permute.xlu0 1
    %104 = vperm.xlu0 %103, %v34
    %v105 = vpop.permute.xlu0 %104
    %107 = vset.pattern.permute.xlu0 1
    %108 = vperm.xlu0 %107, %v36
    %v109 = vpop.permute.xlu0 %108
    %111 = vset.pattern.permute.xlu0 1
    %112 = vperm.xlu0 %111, %v38
    %v113 = vpop.permute.xlu0 %112
    %115 = vset.pattern.permute.xlu0 1
    %116 = vperm.xlu0 %115, %v40
    %v117 = vpop.permute.xlu0 %116
    %119 = vset.pattern.permute.xlu0 1
    %120 = vperm.xlu0 %119, %v42
    %v121 = vpop.permute.xlu0 %120
    %123 = vset.pattern.permute.xlu0 1
    %124 = vperm.xlu0 %123, %v44
    %v125 = vpop.permute.xlu0 %124
    %127 = vset.pattern.permute.xlu0 1
    %128 = vperm.xlu0 %127, %v46
    %v129 = vpop.permute.xlu0 %128
    %131 = vset.pattern.permute.xlu0 1
    %132 = vperm.xlu0 %131, %v48
    %v133 = vpop.permute.xlu0 %132
    %v135 = vlaneseq
    %v136 = vshrl.u32 %v135, 7
    %v137 = vsub.s32 0, %v136
    %v138 = vrot.slane %v102, %v137
    %v139 = vmul.f32 %v105, %v138
    %v140 = vmul.f32 %v109, %v138
    %v141 = vmul.f32 %v113, %v138
    %v142 = vmul.f32 %v117, %v138
    %v143 = vmul.f32 %v121, %v138
    %v144 = vmul.f32 %v125, %v138
    %v145 = vmul.f32 %v129, %v138
    %v146 = vmul.f32 %v133, %v138
    %v147 = vadd.f32 %v94, %v139
    %v148 = vadd.f32 %v95, %v140
    %v149 = vadd.f32 %v96, %v141
    %v150 = vadd.f32 %v97, %v142
    %v151 = vadd.f32 %v98, %v143
    %v152 = vadd.f32 %v99, %v144
    %v153 = vadd.f32 %v100, %v145
    %v154 = vadd.f32 %v101, %v146
    %s155 = scalar_lea.vmem %s0, 1
    %v156 = vld [vmem:[%s155] ss:$2 sm:$0xff]
    %s157 = scalar_lea.vmem %s0, 17
    %v158 = vld [vmem:[%s157] ss:$2 sm:$0xff]
    %s159 = scalar_lea.vmem %s0, 33
    %v160 = vld [vmem:[%s159] ss:$2 sm:$0xff]
    %s161 = scalar_lea.vmem %s0, 49
    %v162 = vld [vmem:[%s161] ss:$2 sm:$0xff]
    %s163 = scalar_lea.vmem %s0, 65
    %v164 = vld [vmem:[%s163] ss:$2 sm:$0xff]
    %s165 = scalar_lea.vmem %s0, 81
    %v166 = vld [vmem:[%s165] ss:$2 sm:$0xff]
    %s167 = scalar_lea.vmem %s0, 97
    %v168 = vld [vmem:[%s167] ss:$2 sm:$0xff]
    %s169 = scalar_lea.vmem %s0, 113
    %v170 = vld [vmem:[%s169] ss:$2 sm:$0xff]
    %v171 = vld [vmem:[%s1 + $0x8] sm:$0x1]
    %173 = vset.pattern.permute.xlu0 0
    %174 = vperm.xlu0 %173, %v156
    %v175 = vpop.permute.xlu0 %174
    %178 = vset.pattern.permute.xlu0 0
    %179 = vperm.xlu0 %178, %v158
    %v180 = vpop.permute.xlu0 %179
    %183 = vset.pattern.permute.xlu0 0
    %184 = vperm.xlu0 %183, %v160
    %v185 = vpop.permute.xlu0 %184
    %188 = vset.pattern.permute.xlu0 0
    %189 = vperm.xlu0 %188, %v162
    %v190 = vpop.permute.xlu0 %189
    %193 = vset.pattern.permute.xlu0 0
    %194 = vperm.xlu0 %193, %v164
    %v195 = vpop.permute.xlu0 %194
    %198 = vset.pattern.permute.xlu0 0
    %199 = vperm.xlu0 %198, %v166
    %v200 = vpop.permute.xlu0 %199
    %203 = vset.pattern.permute.xlu0 0
    %204 = vperm.xlu0 %203, %v168
    %v205 = vpop.permute.xlu0 %204
    %208 = vset.pattern.permute.xlu0 0
    %209 = vperm.xlu0 %208, %v170
    %v210 = vpop.permute.xlu0 %209
    %v212 = vlaneseq
    %v213 = vshrl.u32 %v212, 7
    %v214 = vsub.s32 0, %v213
    %v215 = vrot.slane %v171, %v214
    %v216 = vmul.f32 %v175, %v215
    %v217 = vmul.f32 %v180, %v215
    %v218 = vmul.f32 %v185, %v215
    %v219 = vmul.f32 %v190, %v215
    %v220 = vmul.f32 %v195, %v215
    %v221 = vmul.f32 %v200, %v215
    %v222 = vmul.f32 %v205, %v215
    %v223 = vmul.f32 %v210, %v215
    %v224 = vadd.f32 %v147, %v216
    %v225 = vadd.f32 %v148, %v217
    %v226 = vadd.f32 %v149, %v218
    %v227 = vadd.f32 %v150, %v219
    %v228 = vadd.f32 %v151, %v220
    %v229 = vadd.f32 %v152, %v221
    %v230 = vadd.f32 %v153, %v222
    %v231 = vadd.f32 %v154, %v223
    %v232 = vld [vmem:[%s1 + $0x9] sm:$0x1]
    %233 = vset.pattern.permute.xlu0 1
    %234 = vperm.xlu0 %233, %v156
    %v235 = vpop.permute.xlu0 %234
    %237 = vset.pattern.permute.xlu0 1
    %238 = vperm.xlu0 %237, %v158
    %v239 = vpop.permute.xlu0 %238
    %241 = vset.pattern.permute.xlu0 1
    %242 = vperm.xlu0 %241, %v160
    %v243 = vpop.permute.xlu0 %242
    %245 = vset.pattern.permute.xlu0 1
    %246 = vperm.xlu0 %245, %v162
    %v247 = vpop.permute.xlu0 %246
    %249 = vset.pattern.permute.xlu0 1
    %250 = vperm.xlu0 %249, %v164
    %v251 = vpop.permute.xlu0 %250
    %253 = vset.pattern.permute.xlu0 1
    %254 = vperm.xlu0 %253, %v166
    %v255 = vpop.permute.xlu0 %254
    %257 = vset.pattern.permute.xlu0 1
    %258 = vperm.xlu0 %257, %v168
    %v259 = vpop.permute.xlu0 %258
    %261 = vset.pattern.permute.xlu0 1
    %262 = vperm.xlu0 %261, %v170
    %v263 = vpop.permute.xlu0 %262
    %v265 = vlaneseq
    %v266 = vshrl.u32 %v265, 7
    %v267 = vsub.s32 0, %v266
    %v268 = vrot.slane %v232, %v267
    %v269 = vmul.f32 %v235, %v268
    %v270 = vmul.f32 %v239, %v268
    %v271 = vmul.f32 %v243, %v268
    %v272 = vmul.f32 %v247, %v268
    %v273 = vmul.f32 %v251, %v268
    %v274 = vmul.f32 %v255, %v268
    %v275 = vmul.f32 %v259, %v268
    %v276 = vmul.f32 %v263, %v268
    %v277 = vadd.f32 %v224, %v269
    %v278 = vadd.f32 %v225, %v270
    %v279 = vadd.f32 %v226, %v271
    %v280 = vadd.f32 %v227, %v272
    %v281 = vadd.f32 %v228, %v273
    %v282 = vadd.f32 %v229, %v274
    %v283 = vadd.f32 %v230, %v275
    %v284 = vadd.f32 %v231, %v276
    %s285 = scalar_lea.vmem %s0, 2
    %v286 = vld [vmem:[%s285] ss:$2 sm:$0xff]
    %s287 = scalar_lea.vmem %s0, 18
    %v288 = vld [vmem:[%s287] ss:$2 sm:$0xff]
    %s289 = scalar_lea.vmem %s0, 34
    %v290 = vld [vmem:[%s289] ss:$2 sm:$0xff]
    %s291 = scalar_lea.vmem %s0, 50
    %v292 = vld [vmem:[%s291] ss:$2 sm:$0xff]
    %s293 = scalar_lea.vmem %s0, 66
    %v294 = vld [vmem:[%s293] ss:$2 sm:$0xff]
    %s295 = scalar_lea.vmem %s0, 82
    %v296 = vld [vmem:[%s295] ss:$2 sm:$0xff]
    %s297 = scalar_lea.vmem %s0, 98
    %v298 = vld [vmem:[%s297] ss:$2 sm:$0xff]
    %s299 = scalar_lea.vmem %s0, 114
    %v300 = vld [vmem:[%s299] ss:$2 sm:$0xff]
    %v301 = vld [vmem:[%s1 + $0x10] sm:$0x1]
    %303 = vset.pattern.permute.xlu0 0
    %304 = vperm.xlu0 %303, %v286
    %v305 = vpop.permute.xlu0 %304
    %308 = vset.pattern.permute.xlu0 0
    %309 = vperm.xlu0 %308, %v288
    %v310 = vpop.permute.xlu0 %309
    %313 = vset.pattern.permute.xlu0 0
    %314 = vperm.xlu0 %313, %v290
    %v315 = vpop.permute.xlu0 %314
    %318 = vset.pattern.permute.xlu0 0
    %319 = vperm.xlu0 %318, %v292
    %v320 = vpop.permute.xlu0 %319
    %323 = vset.pattern.permute.xlu0 0
    %324 = vperm.xlu0 %323, %v294
    %v325 = vpop.permute.xlu0 %324
    %328 = vset.pattern.permute.xlu0 0
    %329 = vperm.xlu0 %328, %v296
    %v330 = vpop.permute.xlu0 %329
    %333 = vset.pattern.permute.xlu0 0
    %334 = vperm.xlu0 %333, %v298
    %v335 = vpop.permute.xlu0 %334
    %338 = vset.pattern.permute.xlu0 0
    %339 = vperm.xlu0 %338, %v300
    %v340 = vpop.permute.xlu0 %339
    %v342 = vlaneseq
    %v343 = vshrl.u32 %v342, 7
    %v344 = vsub.s32 0, %v343
    %v345 = vrot.slane %v301, %v344
    %v346 = vmul.f32 %v305, %v345
    %v347 = vmul.f32 %v310, %v345
    %v348 = vmul.f32 %v315, %v345
    %v349 = vmul.f32 %v320, %v345
    %v350 = vmul.f32 %v325, %v345
    %v351 = vmul.f32 %v330, %v345
    %v352 = vmul.f32 %v335, %v345
    %v353 = vmul.f32 %v340, %v345
    %v354 = vadd.f32 %v277, %v346
    %v355 = vadd.f32 %v278, %v347
    %v356 = vadd.f32 %v279, %v348
    %v357 = vadd.f32 %v280, %v349
    %v358 = vadd.f32 %v281, %v350
    %v359 = vadd.f32 %v282, %v351
    %v360 = vadd.f32 %v283, %v352
    %v361 = vadd.f32 %v284, %v353
    %v362 = vld [vmem:[%s1 + $0x11] sm:$0x1]
    %363 = vset.pattern.permute.xlu0 1
    %364 = vperm.xlu0 %363, %v286
    %v365 = vpop.permute.xlu0 %364
    %367 = vset.pattern.permute.xlu0 1
    %368 = vperm.xlu0 %367, %v288
    %v369 = vpop.permute.xlu0 %368
    %371 = vset.pattern.permute.xlu0 1
    %372 = vperm.xlu0 %371, %v290
    %v373 = vpop.permute.xlu0 %372
    %375 = vset.pattern.permute.xlu0 1
    %376 = vperm.xlu0 %375, %v292
    %v377 = vpop.permute.xlu0 %376
    %379 = vset.pattern.permute.xlu0 1
    %380 = vperm.xlu0 %379, %v294
    %v381 = vpop.permute.xlu0 %380
    %383 = vset.pattern.permute.xlu0 1
    %384 = vperm.xlu0 %383, %v296
    %v385 = vpop.permute.xlu0 %384
    %387 = vset.pattern.permute.xlu0 1
    %388 = vperm.xlu0 %387, %v298
    %v389 = vpop.permute.xlu0 %388
    %391 = vset.pattern.permute.xlu0 1
    %392 = vperm.xlu0 %391, %v300
    %v393 = vpop.permute.xlu0 %392
    %v395 = vlaneseq
    %v396 = vshrl.u32 %v395, 7
    %v397 = vsub.s32 0, %v396
    %v398 = vrot.slane %v362, %v397
    %v399 = vmul.f32 %v365, %v398
    %v400 = vmul.f32 %v369, %v398
    %v401 = vmul.f32 %v373, %v398
    %v402 = vmul.f32 %v377, %v398
    %v403 = vmul.f32 %v381, %v398
    %v404 = vmul.f32 %v385, %v398
    %v405 = vmul.f32 %v389, %v398
    %v406 = vmul.f32 %v393, %v398
    %v407 = vadd.f32 %v354, %v399
    %v408 = vadd.f32 %v355, %v400
    %v409 = vadd.f32 %v356, %v401
    %v410 = vadd.f32 %v357, %v402
    %v411 = vadd.f32 %v358, %v403
    %v412 = vadd.f32 %v359, %v404
    %v413 = vadd.f32 %v360, %v405
    %v414 = vadd.f32 %v361, %v406
    %s415 = scalar_lea.vmem %s0, 3
    %v416 = vld [vmem:[%s415] ss:$2 sm:$0xff]
    %s417 = scalar_lea.vmem %s0, 19
    %v418 = vld [vmem:[%s417] ss:$2 sm:$0xff]
    %s419 = scalar_lea.vmem %s0, 35
    %v420 = vld [vmem:[%s419] ss:$2 sm:$0xff]
    %s421 = scalar_lea.vmem %s0, 51
    %v422 = vld [vmem:[%s421] ss:$2 sm:$0xff]
    %s423 = scalar_lea.vmem %s0, 67
    %v424 = vld [vmem:[%s423] ss:$2 sm:$0xff]
    %s425 = scalar_lea.vmem %s0, 83
    %v426 = vld [vmem:[%s425] ss:$2 sm:$0xff]
    %s427 = scalar_lea.vmem %s0, 99
    %v428 = vld [vmem:[%s427] ss:$2 sm:$0xff]
    %s429 = scalar_lea.vmem %s0, 115
    %v430 = vld [vmem:[%s429] ss:$2 sm:$0xff]
    %v431 = vld [vmem:[%s1 + $0x18] sm:$0x1]
    %433 = vset.pattern.permute.xlu0 0
    %434 = vperm.xlu0 %433, %v416
    %v435 = vpop.permute.xlu0 %434
    %438 = vset.pattern.permute.xlu0 0
    %439 = vperm.xlu0 %438, %v418
    %v440 = vpop.permute.xlu0 %439
    %443 = vset.pattern.permute.xlu0 0
    %444 = vperm.xlu0 %443, %v420
    %v445 = vpop.permute.xlu0 %444
    %448 = vset.pattern.permute.xlu0 0
    %449 = vperm.xlu0 %448, %v422
    %v450 = vpop.permute.xlu0 %449
    %453 = vset.pattern.permute.xlu0 0
    %454 = vperm.xlu0 %453, %v424
    %v455 = vpop.permute.xlu0 %454
    %458 = vset.pattern.permute.xlu0 0
    %459 = vperm.xlu0 %458, %v426
    %v460 = vpop.permute.xlu0 %459
    %463 = vset.pattern.permute.xlu0 0
    %464 = vperm.xlu0 %463, %v428
    %v465 = vpop.permute.xlu0 %464
    %468 = vset.pattern.permute.xlu0 0
    %469 = vperm.xlu0 %468, %v430
    %v470 = vpop.permute.xlu0 %469
    %v472 = vlaneseq
    %v473 = vshrl.u32 %v472, 7
    %v474 = vsub.s32 0, %v473
    %v475 = vrot.slane %v431, %v474
    %v476 = vmul.f32 %v435, %v475
    %v477 = vmul.f32 %v440, %v475
    %v478 = vmul.f32 %v445, %v475
    %v479 = vmul.f32 %v450, %v475
    %v480 = vmul.f32 %v455, %v475
    %v481 = vmul.f32 %v460, %v475
    %v482 = vmul.f32 %v465, %v475
    %v483 = vmul.f32 %v470, %v475
    %v484 = vadd.f32 %v407, %v476
    %v485 = vadd.f32 %v408, %v477
    %v486 = vadd.f32 %v409, %v478
    %v487 = vadd.f32 %v410, %v479
    %v488 = vadd.f32 %v411, %v480
    %v489 = vadd.f32 %v412, %v481
    %v490 = vadd.f32 %v413, %v482
    %v491 = vadd.f32 %v414, %v483
    %v492 = vld [vmem:[%s1 + $0x19] sm:$0x1]
    %493 = vset.pattern.permute.xlu0 1
    %494 = vperm.xlu0 %493, %v416
    %v495 = vpop.permute.xlu0 %494
    %497 = vset.pattern.permute.xlu0 1
    %498 = vperm.xlu0 %497, %v418
    %v499 = vpop.permute.xlu0 %498
    %501 = vset.pattern.permute.xlu0 1
    %502 = vperm.xlu0 %501, %v420
    %v503 = vpop.permute.xlu0 %502
    %505 = vset.pattern.permute.xlu0 1
    %506 = vperm.xlu0 %505, %v422
    %v507 = vpop.permute.xlu0 %506
    %509 = vset.pattern.permute.xlu0 1
    %510 = vperm.xlu0 %509, %v424
    %v511 = vpop.permute.xlu0 %510
    %513 = vset.pattern.permute.xlu0 1
    %514 = vperm.xlu0 %513, %v426
    %v515 = vpop.permute.xlu0 %514
    %517 = vset.pattern.permute.xlu0 1
    %518 = vperm.xlu0 %517, %v428
    %v519 = vpop.permute.xlu0 %518
    %521 = vset.pattern.permute.xlu0 1
    %522 = vperm.xlu0 %521, %v430
    %v523 = vpop.permute.xlu0 %522
    %v525 = vlaneseq
    %v526 = vshrl.u32 %v525, 7
    %v527 = vsub.s32 0, %v526
    %v528 = vrot.slane %v492, %v527
    %v529 = vmul.f32 %v495, %v528
    %v530 = vmul.f32 %v499, %v528
    %v531 = vmul.f32 %v503, %v528
    %v532 = vmul.f32 %v507, %v528
    %v533 = vmul.f32 %v511, %v528
    %v534 = vmul.f32 %v515, %v528
    %v535 = vmul.f32 %v519, %v528
    %v536 = vmul.f32 %v523, %v528
    %v537 = vadd.f32 %v484, %v529
    %v538 = vadd.f32 %v485, %v530
    %v539 = vadd.f32 %v486, %v531
    %v540 = vadd.f32 %v487, %v532
    %v541 = vadd.f32 %v488, %v533
    %v542 = vadd.f32 %v489, %v534
    %v543 = vadd.f32 %v490, %v535
    %v544 = vadd.f32 %v491, %v536
    %v545 = vld [vmem:[%s3] sm:$0x1]
    %v546 = vlaneseq
    %v547 = vshrl.u32 %v546, 7
    %v548 = vsub.s32 0, %v547
    %v549 = vrot.slane %v545, %v548
    %v550 = vadd.f32 %v537, %v549
    %v551 = vadd.f32 %v538, %v549
    %v552 = vadd.f32 %v539, %v549
    %v553 = vadd.f32 %v540, %v549
    %v554 = vadd.f32 %v541, %v549
    %v555 = vadd.f32 %v542, %v549
    %v556 = vadd.f32 %v543, %v549
    %v557 = vadd.f32 %v544, %v549
    %v558 = vlaneseq
    %v559 = vshrl.u32 %v558, 7
    %v560 = vadd.s32 %v559, 8
    %v561 = vadd.s32 %v559, 16
    %v562 = vadd.s32 %v559, 24
    %v563 = vadd.s32 %v559, 32
    %v564 = vadd.s32 %v559, 40
    %v565 = vadd.s32 %v559, 48
    %v566 = vadd.s32 %v559, 56
    %vm567 = vcmp.lt.s32.totalorder %v559, 31
    %vm568 = vcmp.lt.s32.totalorder %v560, 31
    %vm569 = vcmp.lt.s32.totalorder %v561, 31
    %vm570 = vcmp.lt.s32.totalorder %v562, 31
    %vm571 = vcmp.lt.s32.totalorder %v563, 31
    %vm572 = vcmp.lt.s32.totalorder %v564, 31
    %vm573 = vcmp.lt.s32.totalorder %v565, 31
    %vm574 = vcmp.lt.s32.totalorder %v566, 31
    %vm575 = vcmp.ge.s32.totalorder %v559, 32
    %vm576 = vcmp.ge.s32.totalorder %v560, 32
    %vm577 = vcmp.ge.s32.totalorder %v561, 32
    %vm578 = vcmp.ge.s32.totalorder %v562, 32
    %vm579 = vcmp.ge.s32.totalorder %v563, 32
    %vm580 = vcmp.ge.s32.totalorder %v564, 32
    %vm581 = vcmp.ge.s32.totalorder %v565, 32
    %vm582 = vcmp.ge.s32.totalorder %v566, 32
    %vm583 = vcmp.lt.s32.totalorder %v559, 63
    %vm584 = vcmp.lt.s32.totalorder %v560, 63
    %vm585 = vcmp.lt.s32.totalorder %v561, 63
    %vm586 = vcmp.lt.s32.totalorder %v562, 63
    %vm587 = vcmp.lt.s32.totalorder %v563, 63
    %vm588 = vcmp.lt.s32.totalorder %v564, 63
    %vm589 = vcmp.lt.s32.totalorder %v565, 63
    %vm590 = vcmp.lt.s32.totalorder %v566, 63
    %vm591 = vmand %vm575, %vm583
    %vm592 = vmand %vm576, %vm584
    %vm593 = vmand %vm577, %vm585
    %vm594 = vmand %vm578, %vm586
    %vm595 = vmand %vm579, %vm587
    %vm596 = vmand %vm580, %vm588
    %vm597 = vmand %vm581, %vm589
    %vm598 = vmand %vm582, %vm590
    %vm599 = vmor %vm567, %vm591
    %vm600 = vmor %vm568, %vm592
    %vm601 = vmor %vm569, %vm593
    %vm602 = vmor %vm570, %vm594
    %vm603 = vmor %vm571, %vm595
    %vm604 = vmor %vm572, %vm596
    %vm605 = vmor %vm573, %vm597
    %vm606 = vmor %vm574, %vm598
    %v607 = vsel %vm599, 1, 0
    %v608 = vsel %vm600, 1, 0
    %v609 = vsel %vm601, 1, 0
    %v610 = vsel %vm602, 1, 0
    %v611 = vsel %vm603, 1, 0
    %v612 = vsel %vm604, 1, 0
    %v613 = vsel %vm605, 1, 0
    %v614 = vsel %vm606, 1, 0
    %vm615 = vcmp.eq.s32.totalorder %v607, 1
    %vm616 = vcmp.eq.s32.totalorder %v608, 1
    %vm617 = vcmp.eq.s32.totalorder %v609, 1
    %vm618 = vcmp.eq.s32.totalorder %v610, 1
    %vm619 = vcmp.eq.s32.totalorder %v611, 1
    %vm620 = vcmp.eq.s32.totalorder %v612, 1
    %vm621 = vcmp.eq.s32.totalorder %v613, 1
    %vm622 = vcmp.eq.s32.totalorder %v614, 1
    %v623 = vsel %vm615, %v550, 0.0
    %v624 = vsel %vm616, %v551, 0.0
    %v625 = vsel %vm617, %v552, 0.0
    %v626 = vsel %vm618, %v553, 0.0
    %v627 = vsel %vm619, %v554, 0.0
    %v628 = vsel %vm620, %v555, 0.0
    %v629 = vsel %vm621, %v556, 0.0
    %v630 = vsel %vm622, %v557, 0.0
    %vm631 = vcmp.ge.f32.partialorder %v623, 0.0
    %vm632 = vcmp.ge.f32.partialorder %v624, 0.0
    %vm633 = vcmp.ge.f32.partialorder %v625, 0.0
    %vm634 = vcmp.ge.f32.partialorder %v626, 0.0
    %vm635 = vcmp.ge.f32.partialorder %v627, 0.0
    %vm636 = vcmp.ge.f32.partialorder %v628, 0.0
    %vm637 = vcmp.ge.f32.partialorder %v629, 0.0
    %vm638 = vcmp.ge.f32.partialorder %v630, 0.0
    %v639 = vmul.f32 %v623, 0.2
    %v640 = vmul.f32 %v624, 0.2
    %v641 = vmul.f32 %v625, 0.2
    %v642 = vmul.f32 %v626, 0.2
    %v643 = vmul.f32 %v627, 0.2
    %v644 = vmul.f32 %v628, 0.2
    %v645 = vmul.f32 %v629, 0.2
    %v646 = vmul.f32 %v630, 0.2
    %v647 = vsel %vm631, %v623, %v639
    %v648 = vsel %vm632, %v624, %v640
    %v649 = vsel %vm633, %v625, %v641
    %v650 = vsel %vm634, %v626, %v642
    %v651 = vsel %vm635, %v627, %v643
    %v652 = vsel %vm636, %v628, %v644
    %v653 = vsel %vm637, %v629, %v645
    %v654 = vsel %vm638, %v630, %v646
    %v655 = vsel %vm615, %v647, 0.0
    %v656 = vsel %vm616, %v648, 0.0
    %v657 = vsel %vm617, %v649, 0.0
    %v658 = vsel %vm618, %v650, 0.0
    %v659 = vsel %vm619, %v651, 0.0
    %v660 = vsel %vm620, %v652, 0.0
    %v661 = vsel %vm621, %v653, 0.0
    %v662 = vsel %vm622, %v654, 0.0
    %663 = vst [vmem:[#allocation2] sm:$0xff] %v655
    %664 = vst [vmem:[#allocation2 + $0x8] sm:$0xff] %v656
    %665 = vst [vmem:[#allocation2 + $0x10] sm:$0xff] %v657
    %666 = vst [vmem:[#allocation2 + $0x18] sm:$0xff] %v658
    %667 = vst [vmem:[#allocation2 + $0x20] sm:$0xff] %v659
    %668 = vst [vmem:[#allocation2 + $0x28] sm:$0xff] %v660
    %669 = vst [vmem:[#allocation2 + $0x30] sm:$0xff] %v661
    %670 = vst [vmem:[#allocation2 + $0x38] sm:$0xff] %v662
    %v671 = vld [vmem:[#allocation2] ss:$2 sm:$0xff]
    %s672 = scalar_lea.vmem [#allocation2], 16
    %v673 = vld [vmem:[%s672] ss:$2 sm:$0xff]
    %s674 = scalar_lea.vmem [#allocation2], 32
    %v675 = vld [vmem:[%s674] ss:$2 sm:$0xff]
    %s676 = scalar_lea.vmem [#allocation2], 48
    %v677 = vld [vmem:[%s676] ss:$2 sm:$0xff]
    %v678 = vpack.c.bf16 %v673, %v671
    %v679 = vpack.c.bf16 %v677, %v675
    %v680 = vld [vmem:[#allocation4] sm:$0xf]
    %v681 = vld [vmem:[#allocation4 + $0x4] sm:$0xf]
    %v682 = vld [vmem:[#allocation4 + $0x8] sm:$0xf]
    %v683 = vld [vmem:[#allocation4 + $0xc] sm:$0xf]
    %v684 = vld [vmem:[#allocation4 + $0x10] sm:$0xf]
    %v685 = vld [vmem:[#allocation4 + $0x14] sm:$0xf]
    %v686 = vld [vmem:[#allocation4 + $0x18] sm:$0xf]
    %v687 = vld [vmem:[#allocation4 + $0x1c] sm:$0xf]
    %v688 = vld [vmem:[#allocation4 + $0x20] sm:$0xf]
    %v689 = vld [vmem:[#allocation4 + $0x24] sm:$0xf]
    %v690 = vld [vmem:[#allocation4 + $0x28] sm:$0xf]
    %v691 = vld [vmem:[#allocation4 + $0x2c] sm:$0xf]
    %v692 = vld [vmem:[#allocation4 + $0x30] sm:$0xf]
    %v693 = vld [vmem:[#allocation4 + $0x34] sm:$0xf]
    %v694 = vld [vmem:[#allocation4 + $0x38] sm:$0xf]
    %v695 = vld [vmem:[#allocation4 + $0x3c] sm:$0xf]
    %s696 = scalar_lea.vmem [#allocation2], 1
    %v697 = vld [vmem:[%s696] ss:$2 sm:$0xff]
    %s698 = scalar_lea.vmem [#allocation2], 17
    %v699 = vld [vmem:[%s698] ss:$2 sm:$0xff]
    %s700 = scalar_lea.vmem [#allocation2], 33
    %v701 = vld [vmem:[%s700] ss:$2 sm:$0xff]
    %s702 = scalar_lea.vmem [#allocation2], 49
    %v703 = vld [vmem:[%s702] ss:$2 sm:$0xff]
    %v704 = vpack.c.bf16 %v699, %v697
    %v705 = vpack.c.bf16 %v703, %v701
    %s706 = scalar_lea.vmem [#allocation4], 64
    %v707 = vld [vmem:[%s706] sm:$0xf]
    %v708 = vld [vmem:[%s706 + $0x4] sm:$0xf]
    %v709 = vld [vmem:[%s706 + $0x8] sm:$0xf]
    %v710 = vld [vmem:[%s706 + $0xc] sm:$0xf]
    %v711 = vld [vmem:[%s706 + $0x10] sm:$0xf]
    %v712 = vld [vmem:[%s706 + $0x14] sm:$0xf]
    %v713 = vld [vmem:[%s706 + $0x18] sm:$0xf]
    %v714 = vld [vmem:[%s706 + $0x1c] sm:$0xf]
    %v715 = vld [vmem:[%s706 + $0x20] sm:$0xf]
    %v716 = vld [vmem:[%s706 + $0x24] sm:$0xf]
    %v717 = vld [vmem:[%s706 + $0x28] sm:$0xf]
    %v718 = vld [vmem:[%s706 + $0x2c] sm:$0xf]
    %v719 = vld [vmem:[%s706 + $0x30] sm:$0xf]
    %v720 = vld [vmem:[%s706 + $0x34] sm:$0xf]
    %v721 = vld [vmem:[%s706 + $0x38] sm:$0xf]
    %v722 = vld [vmem:[%s706 + $0x3c] sm:$0xf]
    %v739 = vunpack.c.l.b16 %v707
    %v740 = vunpack.c.l.b16 %v708
    %v741 = vunpack.c.l.b16 %v709
    %v742 = vunpack.c.l.b16 %v710
    %v743 = vunpack.c.l.b16 %v711
    %v744 = vunpack.c.l.b16 %v712
    %v745 = vunpack.c.l.b16 %v713
    %v746 = vunpack.c.l.b16 %v714
    %v747 = vunpack.c.l.b16 %v715
    %v748 = vunpack.c.l.b16 %v716
    %v749 = vunpack.c.l.b16 %v717
    %v750 = vunpack.c.l.b16 %v718
    %v751 = vunpack.c.l.b16 %v719
    %v752 = vunpack.c.l.b16 %v720
    %v753 = vunpack.c.l.b16 %v721
    %v754 = vunpack.c.l.b16 %v722
    %v755 = vpack.c.b16 %v740, %v739
    %v756 = vpack.c.b16 %v742, %v741
    %v757 = vpack.c.b16 %v744, %v743
    %v758 = vpack.c.b16 %v746, %v745
    %v759 = vpack.c.b16 %v748, %v747
    %v760 = vpack.c.b16 %v750, %v749
    %v761 = vpack.c.b16 %v752, %v751
    %v762 = vpack.c.b16 %v754, %v753
    %771 = vmatprep.subr.bf16.mxu0 0
    %772 = vmatpush1.bf16.msra.mxu0 %v755
    %773 = vmatprep.subr.bf16.mxu0 0
    %774 = vmatpush1.bf16.msra.mxu0 %v756
    %775 = vmatprep.subr.bf16.mxu0 0
    %776 = vmatpush1.bf16.msra.mxu0 %v757
    %777 = vmatprep.subr.bf16.mxu0 0
    %778 = vmatpush1.bf16.msra.mxu0 %v758
    %779 = vmatprep.subr.bf16.mxu0 0
    %780 = vmatpush1.bf16.msra.mxu0 %v759
    %781 = vmatprep.subr.bf16.mxu0 0
    %782 = vmatpush1.bf16.msra.mxu0 %v760
    %783 = vmatprep.subr.bf16.mxu0 0
    %784 = vmatpush1.bf16.msra.mxu0 %v761
    %785 = vmatprep.subr.bf16.mxu0 0
    %786 = vmatpush1.bf16.msra.mxu0 %v762
    %787 = vmatprep.subr.bf16.mxu0 0
    %788 = vmatpush1.bf16.msra.mxu0 0
    %789 = vmatprep.subr.bf16.mxu0 0
    %790 = vmatpush1.bf16.msra.mxu0 0
    %791 = vmatprep.subr.bf16.mxu0 0
    %792 = vmatpush1.bf16.msra.mxu0 0
    %793 = vmatprep.subr.bf16.mxu0 0
    %794 = vmatpush1.bf16.msra.mxu0 0
    %795 = vmatprep.subr.bf16.mxu0 0
    %796 = vmatpush1.bf16.msra.mxu0 0
    %797 = vmatprep.subr.bf16.mxu0 0
    %798 = vmatpush1.bf16.msra.mxu0 0
    %799 = vmatprep.subr.bf16.mxu0 0
    %800 = vmatpush1.bf16.msra.mxu0 0
    %801 = vmatprep.subr.bf16.mxu0 0
    %802 = vmatpush1.bf16.msra.mxu0 0
    %803 = vmatprep.mubr.bf16.mxu0 0
    %804 = vmatmul.mubr.bf16.gmra.mrb[0].mxu0 %v704
    %v805 = vpop.f32.mrb[0].mxu0
    %v806 = vadd.f32 0.0, %v805
    %v807 = vpop.f32.mrb[0].mxu0
    %v808 = vpop.f32.mrb[0].mxu0
    %v809 = vadd.f32 0.0, %v808
    %v810 = vpop.f32.mrb[0].mxu0
    %811 = vmatprep.mubr.bf16.mxu0 0
    %812 = vmatmul.mubr.bf16.gmra.mrb[0].mxu0 %v705
    %v813 = vpop.f32.mrb[0].mxu0
    %v814 = vadd.f32 0.0, %v813
    %v815 = vpop.f32.mrb[0].mxu0
    %v816 = vpop.f32.mrb[0].mxu0
    %v817 = vadd.f32 0.0, %v816
    %v818 = vpop.f32.mrb[0].mxu0
    %819 = vdwg.mxu0
    %v836 = vunpack.c.l.b16 %v680
    %v837 = vunpack.c.l.b16 %v681
    %v838 = vunpack.c.l.b16 %v682
    %v839 = vunpack.c.l.b16 %v683
    %v840 = vunpack.c.l.b16 %v684
    %v841 = vunpack.c.l.b16 %v685
    %v842 = vunpack.c.l.b16 %v686
    %v843 = vunpack.c.l.b16 %v687
    %v844 = vunpack.c.l.b16 %v688
    %v845 = vunpack.c.l.b16 %v689
    %v846 = vunpack.c.l.b16 %v690
    %v847 = vunpack.c.l.b16 %v691
    %v848 = vunpack.c.l.b16 %v692
    %v849 = vunpack.c.l.b16 %v693
    %v850 = vunpack.c.l.b16 %v694
    %v851 = vunpack.c.l.b16 %v695
    %v852 = vpack.c.b16 %v837, %v836
    %v853 = vpack.c.b16 %v839, %v838
    %v854 = vpack.c.b16 %v841, %v840
    %v855 = vpack.c.b16 %v843, %v842
    %v856 = vpack.c.b16 %v845, %v844
    %v857 = vpack.c.b16 %v847, %v846
    %v858 = vpack.c.b16 %v849, %v848
    %v859 = vpack.c.b16 %v851, %v850
    %868 = vmatprep.subr.bf16.mxu0 0
    %869 = vmatpush1.bf16.msra.mxu0 %v852
    %870 = vmatprep.subr.bf16.mxu0 0
    %871 = vmatpush1.bf16.msra.mxu0 %v853
    %872 = vmatprep.subr.bf16.mxu0 0
    %873 = vmatpush1.bf16.msra.mxu0 %v854
    %874 = vmatprep.subr.bf16.mxu0 0
    %875 = vmatpush1.bf16.msra.mxu0 %v855
    %876 = vmatprep.subr.bf16.mxu0 0
    %877 = vmatpush1.bf16.msra.mxu0 %v856
    %878 = vmatprep.subr.bf16.mxu0 0
    %879 = vmatpush1.bf16.msra.mxu0 %v857
    %880 = vmatprep.subr.bf16.mxu0 0
    %881 = vmatpush1.bf16.msra.mxu0 %v858
    %882 = vmatprep.subr.bf16.mxu0 0
    %883 = vmatpush1.bf16.msra.mxu0 %v859
    %884 = vmatprep.subr.bf16.mxu0 0
    %885 = vmatpush1.bf16.msra.mxu0 0
    %886 = vmatprep.subr.bf16.mxu0 0
    %887 = vmatpush1.bf16.msra.mxu0 0
    %888 = vmatprep.subr.bf16.mxu0 0
    %889 = vmatpush1.bf16.msra.mxu0 0
    %890 = vmatprep.subr.bf16.mxu0 0
    %891 = vmatpush1.bf16.msra.mxu0 0
    %892 = vmatprep.subr.bf16.mxu0 0
    %893 = vmatpush1.bf16.msra.mxu0 0
    %894 = vmatprep.subr.bf16.mxu0 0
    %895 = vmatpush1.bf16.msra.mxu0 0
    %896 = vmatprep.subr.bf16.mxu0 0
    %897 = vmatpush1.bf16.msra.mxu0 0
    %898 = vmatprep.subr.bf16.mxu0 0
    %899 = vmatpush1.bf16.msra.mxu0 0
    %900 = vmatprep.mubr.bf16.mxu0 0
    %901 = vmatmul.mubr.bf16.gmra.mrb[0].mxu0 %v678
    %v902 = vpop.f32.mrb[0].mxu0
    %v903 = vadd.f32 %v806, %v902
    %v904 = vpop.f32.mrb[0].mxu0
    %v905 = vpop.f32.mrb[0].mxu0
    %v906 = vadd.f32 %v809, %v905
    %v907 = vpop.f32.mrb[0].mxu0
    %908 = vmatprep.mubr.bf16.mxu0 0
    %909 = vmatmul.mubr.bf16.gmra.mrb[0].mxu0 %v679
    %v910 = vpop.f32.mrb[0].mxu0
    %v911 = vadd.f32 %v814, %v910
    %v912 = vpop.f32.mrb[0].mxu0
    %v913 = vpop.f32.mrb[0].mxu0
    %v914 = vadd.f32 %v817, %v913
    %v915 = vpop.f32.mrb[0].mxu0
    %916 = vdwg.mxu0
    %s917 = scalar_lea.vmem [#allocation2], 2
    %v918 = vld [vmem:[%s917] ss:$2 sm:$0xff]
    %s919 = scalar_lea.vmem [#allocation2], 18
    %v920 = vld [vmem:[%s919] ss:$2 sm:$0xff]
    %s921 = scalar_lea.vmem [#allocation2], 34
    %v922 = vld [vmem:[%s921] ss:$2 sm:$0xff]
    %s923 = scalar_lea.vmem [#allocation2], 50
    %v924 = vld [vmem:[%s923] ss:$2 sm:$0xff]
    %v925 = vpack.c.bf16 %v920, %v918
    %v926 = vpack.c.bf16 %v924, %v922
    %s927 = scalar_lea.vmem [#allocation4], 128
    %v928 = vld [vmem:[%s927] sm:$0xf]
    %v929 = vld [vmem:[%s927 + $0x4] sm:$0xf]
    %v930 = vld [vmem:[%s927 + $0x8] sm:$0xf]
    %v931 = vld [vmem:[%s927 + $0xc] sm:$0xf]
    %v932 = vld [vmem:[%s927 + $0x10] sm:$0xf]
    %v933 = vld [vmem:[%s927 + $0x14] sm:$0xf]
    %v934 = vld [vmem:[%s927 + $0x18] sm:$0xf]
    %v935 = vld [vmem:[%s927 + $0x1c] sm:$0xf]
    %v936 = vld [vmem:[%s927 + $0x20] sm:$0xf]
    %v937 = vld [vmem:[%s927 + $0x24] sm:$0xf]
    %v938 = vld [vmem:[%s927 + $0x28] sm:$0xf]
    %v939 = vld [vmem:[%s927 + $0x2c] sm:$0xf]
    %v940 = vld [vmem:[%s927 + $0x30] sm:$0xf]
    %v941 = vld [vmem:[%s927 + $0x34] sm:$0xf]
    %v942 = vld [vmem:[%s927 + $0x38] sm:$0xf]
    %v943 = vld [vmem:[%s927 + $0x3c] sm:$0xf]
    %v960 = vunpack.c.l.b16 %v928
    %v961 = vunpack.c.l.b16 %v929
    %v962 = vunpack.c.l.b16 %v930
    %v963 = vunpack.c.l.b16 %v931
    %v964 = vunpack.c.l.b16 %v932
    %v965 = vunpack.c.l.b16 %v933
    %v966 = vunpack.c.l.b16 %v934
    %v967 = vunpack.c.l.b16 %v935
    %v968 = vunpack.c.l.b16 %v936
    %v969 = vunpack.c.l.b16 %v937
    %v970 = vunpack.c.l.b16 %v938
    %v971 = vunpack.c.l.b16 %v939
    %v972 = vunpack.c.l.b16 %v940
    %v973 = vunpack.c.l.b16 %v941
    %v974 = vunpack.c.l.b16 %v942
    %v975 = vunpack.c.l.b16 %v943
    %v976 = vpack.c.b16 %v961, %v960
    %v977 = vpack.c.b16 %v963, %v962
    %v978 = vpack.c.b16 %v965, %v964
    %v979 = vpack.c.b16 %v967, %v966
    %v980 = vpack.c.b16 %v969, %v968
    %v981 = vpack.c.b16 %v971, %v970
    %v982 = vpack.c.b16 %v973, %v972
    %v983 = vpack.c.b16 %v975, %v974
    %992 = vmatprep.subr.bf16.mxu0 0
    %993 = vmatpush1.bf16.msra.mxu0 %v976
    %994 = vmatprep.subr.bf16.mxu0 0
    %995 = vmatpush1.bf16.msra.mxu0 %v977
    %996 = vmatprep.subr.bf16.mxu0 0
    %997 = vmatpush1.bf16.msra.mxu0 %v978
    %998 = vmatprep.subr.bf16.mxu0 0
    %999 = vmatpush1.bf16.msra.mxu0 %v979
    %1000 = vmatprep.subr.bf16.mxu0 0
    %1001 = vmatpush1.bf16.msra.mxu0 %v980
    %1002 = vmatprep.subr.bf16.mxu0 0
    %1003 = vmatpush1.bf16.msra.mxu0 %v981
    %1004 = vmatprep.subr.bf16.mxu0 0
    %1005 = vmatpush1.bf16.msra.mxu0 %v982
    %1006 = vmatprep.subr.bf16.mxu0 0
    %1007 = vmatpush1.bf16.msra.mxu0 %v983
    %1008 = vmatprep.subr.bf16.mxu0 0
    %1009 = vmatpush1.bf16.msra.mxu0 0
    %1010 = vmatprep.subr.bf16.mxu0 0
    %1011 = vmatpush1.bf16.msra.mxu0 0
    %1012 = vmatprep.subr.bf16.mxu0 0
    %1013 = vmatpush1.bf16.msra.mxu0 0
    %1014 = vmatprep.subr.bf16.mxu0 0
    %1015 = vmatpush1.bf16.msra.mxu0 0
    %1016 = vmatprep.subr.bf16.mxu0 0
    %1017 = vmatpush1.bf16.msra.mxu0 0
    %1018 = vmatprep.subr.bf16.mxu0 0
    %1019 = vmatpush1.bf16.msra.mxu0 0
    %1020 = vmatprep.subr.bf16.mxu0 0
    %1021 = vmatpush1.bf16.msra.mxu0 0
    %1022 = vmatprep.subr.bf16.mxu0 0
    %1023 = vmatpush1.bf16.msra.mxu0 0
    %1024 = vmatprep.mubr.bf16.mxu0 0
    %1025 = vmatmul.mubr.bf16.gmra.mrb[0].mxu0 %v925
    %v1026 = vpop.f32.mrb[0].mxu0
    %v1027 = vadd.f32 0.0, %v1026
    %v1028 = vpop.f32.mrb[0].mxu0
    %v1029 = vpop.f32.mrb[0].mxu0
    %v1030 = vadd.f32 0.0, %v1029
    %v1031 = vpop.f32.mrb[0].mxu0
    %1032 = vmatprep.mubr.bf16.mxu0 0
    %1033 = vmatmul.mubr.bf16.gmra.mrb[0].mxu0 %v926
    %v1034 = vpop.f32.mrb[0].mxu0
    %v1035 = vadd.f32 0.0, %v1034
    %v1036 = vpop.f32.mrb[0].mxu0
    %v1037 = vpop.f32.mrb[0].mxu0
    %v1038 = vadd.f32 0.0, %v1037
    %v1039 = vpop.f32.mrb[0].mxu0
    %1040 = vdwg.mxu0
    %v1041 = vadd.f32 %v903, %v1027
    %v1042 = vadd.f32 %v906, %v1030
    %v1043 = vadd.f32 %v911, %v1035
    %v1044 = vadd.f32 %v914, %v1038
    %s1045 = scalar_lea.vmem [#allocation2], 3
    %v1046 = vld [vmem:[%s1045] ss:$2 sm:$0xff]
    %s1047 = scalar_lea.vmem [#allocation2], 19
    %v1048 = vld [vmem:[%s1047] ss:$2 sm:$0xff]
    %s1049 = scalar_lea.vmem [#allocation2], 35
    %v1050 = vld [vmem:[%s1049] ss:$2 sm:$0xff]
    %s1051 = scalar_lea.vmem [#allocation2], 51
    %v1052 = vld [vmem:[%s1051] ss:$2 sm:$0xff]
    %v1053 = vpack.c.bf16 %v1048, %v1046
    %v1054 = vpack.c.bf16 %v1052, %v1050
    %s1055 = scalar_lea.vmem [#allocation4], 192
    %v1056 = vld [vmem:[%s1055] sm:$0xf]
    %v1057 = vld [vmem:[%s1055 + $0x4] sm:$0xf]
    %v1058 = vld [vmem:[%s1055 + $0x8] sm:$0xf]
    %v1059 = vld [vmem:[%s1055 + $0xc] sm:$0xf]
    %v1060 = vld [vmem:[%s1055 + $0x10] sm:$0xf]
    %v1061 = vld [vmem:[%s1055 + $0x14] sm:$0xf]
    %v1062 = vld [vmem:[%s1055 + $0x18] sm:$0xf]
    %v1063 = vld [vmem:[%s1055 + $0x1c] sm:$0xf]
    %v1064 = vld [vmem:[%s1055 + $0x20] sm:$0xf]
    %v1065 = vld [vmem:[%s1055 + $0x24] sm:$0xf]
    %v1066 = vld [vmem:[%s1055 + $0x28] sm:$0xf]
    %v1067 = vld [vmem:[%s1055 + $0x2c] sm:$0xf]
    %v1068 = vld [vmem:[%s1055 + $0x30] sm:$0xf]
    %v1069 = vld [vmem:[%s1055 + $0x34] sm:$0xf]
    %v1070 = vld [vmem:[%s1055 + $0x38] sm:$0xf]
    %v1071 = vld [vmem:[%s1055 + $0x3c] sm:$0xf]
    %v1088 = vunpack.c.l.b16 %v1056
    %v1089 = vunpack.c.l.b16 %v1057
    %v1090 = vunpack.c.l.b16 %v1058
    %v1091 = vunpack.c.l.b16 %v1059
    %v1092 = vunpack.c.l.b16 %v1060
    %v1093 = vunpack.c.l.b16 %v1061
    %v1094 = vunpack.c.l.b16 %v1062
    %v1095 = vunpack.c.l.b16 %v1063
    %v1096 = vunpack.c.l.b16 %v1064
    %v1097 = vunpack.c.l.b16 %v1065
    %v1098 = vunpack.c.l.b16 %v1066
    %v1099 = vunpack.c.l.b16 %v1067
    %v1100 = vunpack.c.l.b16 %v1068
    %v1101 = vunpack.c.l.b16 %v1069
    %v1102 = vunpack.c.l.b16 %v1070
    %v1103 = vunpack.c.l.b16 %v1071
    %v1104 = vpack.c.b16 %v1089, %v1088
    %v1105 = vpack.c.b16 %v1091, %v1090
    %v1106 = vpack.c.b16 %v1093, %v1092
    %v1107 = vpack.c.b16 %v1095, %v1094
    %v1108 = vpack.c.b16 %v1097, %v1096
    %v1109 = vpack.c.b16 %v1099, %v1098
    %v1110 = vpack.c.b16 %v1101, %v1100
    %v1111 = vpack.c.b16 %v1103, %v1102
    %1120 = vmatprep.subr.bf16.mxu0 0
    %1121 = vmatpush1.bf16.msra.mxu0 %v1104
    %1122 = vmatprep.subr.bf16.mxu0 0
    %1123 = vmatpush1.bf16.msra.mxu0 %v1105
    %1124 = vmatprep.subr.bf16.mxu0 0
    %1125 = vmatpush1.bf16.msra.mxu0 %v1106
    %1126 = vmatprep.subr.bf16.mxu0 0
    %1127 = vmatpush1.bf16.msra.mxu0 %v1107
    %1128 = vmatprep.subr.bf16.mxu0 0
    %1129 = vmatpush1.bf16.msra.mxu0 %v1108
    %1130 = vmatprep.subr.bf16.mxu0 0
    %1131 = vmatpush1.bf16.msra.mxu0 %v1109
    %1132 = vmatprep.subr.bf16.mxu0 0
    %1133 = vmatpush1.bf16.msra.mxu0 %v1110
    %1134 = vmatprep.subr.bf16.mxu0 0
    %1135 = vmatpush1.bf16.msra.mxu0 %v1111
    %1136 = vmatprep.subr.bf16.mxu0 0
    %1137 = vmatpush1.bf16.msra.mxu0 0
    %1138 = vmatprep.subr.bf16.mxu0 0
    %1139 = vmatpush1.bf16.msra.mxu0 0
    %1140 = vmatprep.subr.bf16.mxu0 0
    %1141 = vmatpush1.bf16.msra.mxu0 0
    %1142 = vmatprep.subr.bf16.mxu0 0
    %1143 = vmatpush1.bf16.msra.mxu0 0
    %1144 = vmatprep.subr.bf16.mxu0 0
    %1145 = vmatpush1.bf16.msra.mxu0 0
    %1146 = vmatprep.subr.bf16.mxu0 0
    %1147 = vmatpush1.bf16.msra.mxu0 0
    %1148 = vmatprep.subr.bf16.mxu0 0
    %1149 = vmatpush1.bf16.msra.mxu0 0
    %1150 = vmatprep.subr.bf16.mxu0 0
    %1151 = vmatpush1.bf16.msra.mxu0 0
    %1152 = vmatprep.mubr.bf16.mxu0 0
    %1153 = vmatmul.mubr.bf16.gmra.mrb[0].mxu0 %v1053
    %v1154 = vpop.f32.mrb[0].mxu0
    %v1155 = vadd.f32 0.0, %v1154
    %v1156 = vpop.f32.mrb[0].mxu0
    %v1157 = vpop.f32.mrb[0].mxu0
    %v1158 = vadd.f32 0.0, %v1157
    %v1159 = vpop.f32.mrb[0].mxu0
    %1160 = vmatprep.mubr.bf16.mxu0 0
    %1161 = vmatmul.mubr.bf16.gmra.mrb[0].mxu0 %v1054
    %v1162 = vpop.f32.mrb[0].mxu0
    %v1163 = vadd.f32 0.0, %v1162
    %v1164 = vpop.f32.mrb[0].mxu0
    %v1165 = vpop.f32.mrb[0].mxu0
    %v1166 = vadd.f32 0.0, %v1165
    %v1167 = vpop.f32.mrb[0].mxu0
    %1168 = vdwg.mxu0
    %v1169 = vadd.f32 %v1041, %v1155
    %v1170 = vadd.f32 %v1042, %v1158
    %v1171 = vadd.f32 %v1043, %v1163
    %v1172 = vadd.f32 %v1044, %v1166
    %vm1173 = vcmp.lt.s32.totalorder %v559, 14
    %vm1174 = vcmp.lt.s32.totalorder %v560, 14
    %vm1175 = vcmp.lt.s32.totalorder %v561, 14
    %vm1176 = vcmp.lt.s32.totalorder %v562, 14
    %vm1177 = vcmp.ge.s32.totalorder %v559, 16
    %vm1178 = vcmp.ge.s32.totalorder %v560, 16
    %vm1179 = vcmp.ge.s32.totalorder %v561, 16
    %vm1180 = vcmp.ge.s32.totalorder %v562, 16
    %vm1181 = vcmp.lt.s32.totalorder %v559, 30
    %vm1182 = vcmp.lt.s32.totalorder %v560, 30
    %vm1183 = vcmp.lt.s32.totalorder %v561, 30
    %vm1184 = vcmp.lt.s32.totalorder %v562, 30
    %vm1185 = vmand %vm1177, %vm1181
    %vm1186 = vmand %vm1178, %vm1182
    %vm1187 = vmand %vm1179, %vm1183
    %vm1188 = vmand %vm1180, %vm1184
    %vm1189 = vmor %vm1173, %vm1185
    %vm1190 = vmor %vm1174, %vm1186
    %vm1191 = vmor %vm1175, %vm1187
    %vm1192 = vmor %vm1176, %vm1188
    %v1193 = vsel %vm1189, 1, 0
    %v1194 = vsel %vm1190, 1, 0
    %v1195 = vsel %vm1191, 1, 0
    %v1196 = vsel %vm1192, 1, 0
    %vm1197 = vcmp.eq.s32.totalorder %v1193, 1
    %vm1198 = vcmp.eq.s32.totalorder %v1194, 1
    %vm1199 = vcmp.eq.s32.totalorder %v1195, 1
    %vm1200 = vcmp.eq.s32.totalorder %v1196, 1
    %v1201 = vsel %vm1197, %v1169, 0.0
    %v1202 = vsel %vm1198, %v1170, 0.0
    %v1203 = vsel %vm1199, %v1171, 0.0
    %v1204 = vsel %vm1200, %v1172, 0.0
    %v1205 = vld [vmem:[%s3 + $0x4] sm:$0x1]
    %v1206 = vld [vmem:[%s3 + $0x5] sm:$0x1]
    %v1207 = vadd.f32 %v1201, %v1202
    %v1208 = vadd.f32 %v1207, %v1203
    %v1209 = vadd.f32 %v1208, %v1204
    %v1210 = vrot.slane %v1209, 4
    %v1211 = vadd.f32 %v1209, %v1210
    %v1212 = vrot.slane %v1211, 2
    %v1213 = vadd.f32 %v1211, %v1212
    %v1214 = vrot.slane %v1213, 1
    %v1215 = vadd.f32 %v1213, %v1214
    %v1216 = vmul.f32 %v1215, 0.035714287
    %v1217 = vsub.f32 %v1201, %v1216
    %v1218 = vsub.f32 %v1202, %v1216
    %v1219 = vsub.f32 %v1203, %v1216
    %v1220 = vsub.f32 %v1204, %v1216
    %v1221 = vsel %vm1197, %v1217, 0.0
    %v1222 = vsel %vm1198, %v1218, 0.0
    %v1223 = vsel %vm1199, %v1219, 0.0
    %v1224 = vsel %vm1200, %v1220, 0.0
    %v1225 = vmul.f32 %v1221, %v1221
    %v1226 = vmul.f32 %v1222, %v1222
    %v1227 = vmul.f32 %v1223, %v1223
    %v1228 = vmul.f32 %v1224, %v1224
    %v1229 = vadd.f32 %v1225, %v1226
    %v1230 = vadd.f32 %v1229, %v1227
    %v1231 = vadd.f32 %v1230, %v1228
    %v1232 = vrot.slane %v1231, 4
    %v1233 = vadd.f32 %v1231, %v1232
    %v1234 = vrot.slane %v1233, 2
    %v1235 = vadd.f32 %v1233, %v1234
    %v1236 = vrot.slane %v1235, 1
    %v1237 = vadd.f32 %v1235, %v1236
    %v1238 = vmul.f32 %v1237, 0.035714287
    %v1239 = vadd.f32 %v1238, 1e-05
    %v1240 = vrsqrt.pop %v1239
    %v1241 = vmul.f32 %v1240, %v1205
    %v1242 = vlaneseq
    %v1243 = vshrl.u32 %v1242, 7
    %v1244 = vsub.s32 0, %v1243
    %v1245 = vrot.slane %v1241, %v1244
    %v1246 = vmul.f32 %v1221, %v1245
    %v1247 = vmul.f32 %v1222, %v1245
    %v1248 = vmul.f32 %v1223, %v1245
    %v1249 = vmul.f32 %v1224, %v1245
    %v1250 = vlaneseq
    %v1251 = vshrl.u32 %v1250, 7
    %v1252 = vsub.s32 0, %v1251
    %v1253 = vrot.slane %v1206, %v1252
    %v1254 = vadd.f32 %v1246, %v1253
    %v1255 = vadd.f32 %v1247, %v1253
    %v1256 = vadd.f32 %v1248, %v1253
    %v1257 = vadd.f32 %v1249, %v1253
    %vm1258 = vcmp.ge.f32.partialorder %v1254, 0.0
    %vm1259 = vcmp.ge.f32.partialorder %v1255, 0.0
    %vm1260 = vcmp.ge.f32.partialorder %v1256, 0.0
    %vm1261 = vcmp.ge.f32.partialorder %v1257, 0.0
    %v1262 = vmul.f32 %v1254, 0.2
    %v1263 = vmul.f32 %v1255, 0.2
    %v1264 = vmul.f32 %v1256, 0.2
    %v1265 = vmul.f32 %v1257, 0.2
    %v1266 = vsel %vm1258, %v1254, %v1262
    %v1267 = vsel %vm1259, %v1255, %v1263
    %v1268 = vsel %vm1260, %v1256, %v1264
    %v1269 = vsel %vm1261, %v1257, %v1265
    %v1270 = vsel %vm1197, %v1266, 0.0
    %v1271 = vsel %vm1198, %v1267, 0.0
    %v1272 = vsel %vm1199, %v1268, 0.0
    %v1273 = vsel %vm1200, %v1269, 0.0
    %v1274 = vpack.c.bf16 %v1271, %v1270
    %v1275 = vpack.c.bf16 %v1273, %v1272
    %v1278 = vunpack.c.l.b16 %v1274
    %v1279 = vunpack.c.h.b16 %v1274
    %v1280 = vunpack.c.l.b16 %v1275
    %v1281 = vunpack.c.h.b16 %v1275
    %v1282 = vpack.c.b16 %v1278, %v1278
    %v1283 = vpack.c.b16 %v1279, %v1279
    %v1284 = vpack.c.b16 %v1280, %v1280
    %v1285 = vpack.c.b16 %v1281, %v1281
    %1290 = vst [vmem:[#allocation3] sm:$0xf] %v1282
    %1291 = vst [vmem:[#allocation3 + $0x4] sm:$0xf] %v1283
    %1292 = vst [vmem:[#allocation3 + $0x8] sm:$0xf] %v1284
    %1293 = vst [vmem:[#allocation3 + $0xc] sm:$0xf] %v1285
    %v1294 = vld [vmem:[#allocation3] sm:$0xf]
    %v1295 = vld [vmem:[#allocation3 + $0x4] sm:$0xf]
    %v1296 = vld [vmem:[#allocation3 + $0x8] sm:$0xf]
    %v1297 = vld [vmem:[#allocation3 + $0xc] sm:$0xf]
    %s1298 = scalar_lea.vmem [#allocation4], 256
    %v1299 = vld [vmem:[%s1298] sm:$0xf]
    %v1300 = vld [vmem:[%s1298 + $0x4] sm:$0xf]
    %v1301 = vld [vmem:[%s1298 + $0x8] sm:$0xf]
    %v1302 = vld [vmem:[%s1298 + $0xc] sm:$0xf]
    %v1303 = vld [vmem:[%s1298 + $0x10] sm:$0xf]
    %v1304 = vld [vmem:[%s1298 + $0x14] sm:$0xf]
    %v1305 = vld [vmem:[%s1298 + $0x18] sm:$0xf]
    %v1306 = vld [vmem:[%s1298 + $0x1c] sm:$0xf]
    %v1307 = vld [vmem:[%s1298 + $0x20] sm:$0xf]
    %v1308 = vld [vmem:[%s1298 + $0x24] sm:$0xf]
    %v1309 = vld [vmem:[%s1298 + $0x28] sm:$0xf]
    %v1310 = vld [vmem:[%s1298 + $0x2c] sm:$0xf]
    %v1311 = vld [vmem:[%s1298 + $0x30] sm:$0xf]
    %v1312 = vld [vmem:[%s1298 + $0x34] sm:$0xf]
    %v1313 = vld [vmem:[%s1298 + $0x38] sm:$0xf]
    %v1314 = vld [vmem:[%s1298 + $0x3c] sm:$0xf]
    %v1315 = vld [vmem:[#allocation3] sm:$0xf]
    %v1316 = vld [vmem:[#allocation3 + $0x4] sm:$0xf]
    %v1317 = vld [vmem:[#allocation3 + $0x8] sm:$0xf]
    %v1318 = vld [vmem:[#allocation3 + $0xc] sm:$0xf]
    %v1319 = vld [vmem:[#allocation3 + $0x10] sm:$0x1]
    %s1320 = scalar_lea.vmem [#allocation4], 320
    %v1321 = vld [vmem:[%s1320] sm:$0xf]
    %v1322 = vld [vmem:[%s1320 + $0x4] sm:$0xf]
    %v1323 = vld [vmem:[%s1320 + $0x8] sm:$0xf]
    %v1324 = vld [vmem:[%s1320 + $0xc] sm:$0xf]
    %v1325 = vld [vmem:[%s1320 + $0x10] sm:$0xf]
    %v1326 = vld [vmem:[%s1320 + $0x14] sm:$0xf]
    %v1327 = vld [vmem:[%s1320 + $0x18] sm:$0xf]
    %v1328 = vld [vmem:[%s1320 + $0x1c] sm:$0xf]
    %v1329 = vld [vmem:[%s1320 + $0x20] sm:$0xf]
    %v1330 = vld [vmem:[%s1320 + $0x24] sm:$0xf]
    %v1331 = vld [vmem:[%s1320 + $0x28] sm:$0xf]
    %v1332 = vld [vmem:[%s1320 + $0x2c] sm:$0xf]
    %v1333 = vld [vmem:[%s1320 + $0x30] sm:$0xf]
    %v1334 = vld [vmem:[%s1320 + $0x34] sm:$0xf]
    %v1335 = vld [vmem:[%s1320 + $0x38] sm:$0xf]
    %v1336 = vld [vmem:[%s1320 + $0x3c] sm:$0xf]
    %v1342 = vunpack.c.l.b16 %v1315
    %v1343 = vunpack.c.l.b16 %v1316
    %v1344 = vunpack.c.l.b16 %v1317
    %v1345 = vunpack.c.l.b16 %v1318
    %v1346 = vunpack.c.l.b16 %v1319
    %v1347 = vpack.c.b16 %v1343, %v1342
    %v1348 = vpack.c.b16 %v1345, %v1344
    %v1349 = vpack.c.b16 %v1346, %v1346
    %vm1350 = vsmask.f32 7424
    %v1352 = vshrl.u32 %v1347, 16
    %v1354 = vshll.u32 %v1347, 16
    %v1356 = vrot.slane %v1354, 1
    %v1357 = vor.u32 %v1352, %v1356
    %v1359 = vshll.u32 %v1348, 16
    %v1361 = vrot.slane %v1359, 1
    %v1362 = vsel %vm1350, %v1357, %v1361
    %v1363 = vshrl.u32 %v1348, 16
    %v1365 = vor.u32 %v1363, %v1361
    %v1367 = vshll.u32 %v1349, 16
    %v1369 = vrot.slane %v1367, 1
    %v1370 = vsel %vm1350, %v1365, %v1369
    %v1389 = vunpack.c.l.b16 %v1321
    %v1390 = vunpack.c.l.b16 %v1322
    %v1391 = vunpack.c.l.b16 %v1323
    %v1392 = vunpack.c.l.b16 %v1324
    %v1393 = vunpack.c.l.b16 %v1325
    %v1394 = vunpack.c.l.b16 %v1326
    %v1395 = vunpack.c.l.b16 %v1327
    %v1396 = vunpack.c.l.b16 %v1328
    %v1397 = vunpack.c.l.b16 %v1329
    %v1398 = vunpack.c.l.b16 %v1330
    %v1399 = vunpack.c.l.b16 %v1331
    %v1400 = vunpack.c.l.b16 %v1332
    %v1401 = vunpack.c.l.b16 %v1333
    %v1402 = vunpack.c.l.b16 %v1334
    %v1403 = vunpack.c.l.b16 %v1335
    %v1404 = vunpack.c.l.b16 %v1336
    %v1405 = vpack.c.b16 %v1390, %v1389
    %v1406 = vpack.c.b16 %v1392, %v1391
    %v1407 = vpack.c.b16 %v1394, %v1393
    %v1408 = vpack.c.b16 %v1396, %v1395
    %v1409 = vpack.c.b16 %v1398, %v1397
    %v1410 = vpack.c.b16 %v1400, %v1399
    %v1411 = vpack.c.b16 %v1402, %v1401
    %v1412 = vpack.c.b16 %v1404, %v1403
    %1421 = vmatprep.subr.bf16.mxu0 0
    %1422 = vmatpush1.bf16.msra.mxu0 %v1405
    %1423 = vmatprep.subr.bf16.mxu0 0
    %1424 = vmatpush1.bf16.msra.mxu0 %v1406
    %1425 = vmatprep.subr.bf16.mxu0 0
    %1426 = vmatpush1.bf16.msra.mxu0 %v1407
    %1427 = vmatprep.subr.bf16.mxu0 0
    %1428 = vmatpush1.bf16.msra.mxu0 %v1408
    %1429 = vmatprep.subr.bf16.mxu0 0
    %1430 = vmatpush1.bf16.msra.mxu0 %v1409
    %1431 = vmatprep.subr.bf16.mxu0 0
    %1432 = vmatpush1.bf16.msra.mxu0 %v1410
    %1433 = vmatprep.subr.bf16.mxu0 0
    %1434 = vmatpush1.bf16.msra.mxu0 %v1411
    %1435 = vmatprep.subr.bf16.mxu0 0
    %1436 = vmatpush1.bf16.msra.mxu0 %v1412
    %1437 = vmatprep.subr.bf16.mxu0 0
    %1438 = vmatpush1.bf16.msra.mxu0 0
    %1439 = vmatprep.subr.bf16.mxu0 0
    %1440 = vmatpush1.bf16.msra.mxu0 0
    %1441 = vmatprep.subr.bf16.mxu0 0
    %1442 = vmatpush1.bf16.msra.mxu0 0
    %1443 = vmatprep.subr.bf16.mxu0 0
    %1444 = vmatpush1.bf16.msra.mxu0 0
    %1445 = vmatprep.subr.bf16.mxu0 0
    %1446 = vmatpush1.bf16.msra.mxu0 0
    %1447 = vmatprep.subr.bf16.mxu0 0
    %1448 = vmatpush1.bf16.msra.mxu0 0
    %1449 = vmatprep.subr.bf16.mxu0 0
    %1450 = vmatpush1.bf16.msra.mxu0 0
    %1451 = vmatprep.subr.bf16.mxu0 0
    %1452 = vmatpush1.bf16.msra.mxu0 0
    %1453 = vmatprep.mubr.bf16.mxu0 0
    %1454 = vmatmul.mubr.bf16.gmra.mrb[0].mxu0 %v1362
    %v1455 = vpop.f32.mrb[0].mxu0
    %v1456 = vadd.f32 0.0, %v1455
    %v1457 = vpop.f32.mrb[0].mxu0
    %v1458 = vpop.f32.mrb[0].mxu0
    %v1459 = vadd.f32 0.0, %v1458
    %v1460 = vpop.f32.mrb[0].mxu0
    %1461 = vmatprep.mubr.bf16.mxu0 0
    %1462 = vmatmul.mubr.bf16.gmra.mrb[0].mxu0 %v1370
    %v1463 = vpop.f32.mrb[0].mxu0
    %v1464 = vadd.f32 0.0, %v1463
    %v1465 = vpop.f32.mrb[0].mxu0
    %v1466 = vpop.f32.mrb[0].mxu0
    %v1467 = vadd.f32 0.0, %v1466
    %v1468 = vpop.f32.mrb[0].mxu0
    %1469 = vdwg.mxu0
    %v1474 = vunpack.c.l.b16 %v1294
    %v1475 = vunpack.c.l.b16 %v1295
    %v1476 = vunpack.c.l.b16 %v1296
    %v1477 = vunpack.c.l.b16 %v1297
    %v1478 = vpack.c.b16 %v1475, %v1474
    %v1479 = vpack.c.b16 %v1477, %v1476
    %v1498 = vunpack.c.l.b16 %v1299
    %v1499 = vunpack.c.l.b16 %v1300
    %v1500 = vunpack.c.l.b16 %v1301
    %v1501 = vunpack.c.l.b16 %v1302
    %v1502 = vunpack.c.l.b16 %v1303
    %v1503 = vunpack.c.l.b16 %v1304
    %v1504 = vunpack.c.l.b16 %v1305
    %v1505 = vunpack.c.l.b16 %v1306
    %v1506 = vunpack.c.l.b16 %v1307
    %v1507 = vunpack.c.l.b16 %v1308
    %v1508 = vunpack.c.l.b16 %v1309
    %v1509 = vunpack.c.l.b16 %v1310
    %v1510 = vunpack.c.l.b16 %v1311
    %v1511 = vunpack.c.l.b16 %v1312
    %v1512 = vunpack.c.l.b16 %v1313
    %v1513 = vunpack.c.l.b16 %v1314
    %v1514 = vpack.c.b16 %v1499, %v1498
    %v1515 = vpack.c.b16 %v1501, %v1500
    %v1516 = vpack.c.b16 %v1503, %v1502
    %v1517 = vpack.c.b16 %v1505, %v1504
    %v1518 = vpack.c.b16 %v1507, %v1506
    %v1519 = vpack.c.b16 %v1509, %v1508
    %v1520 = vpack.c.b16 %v1511, %v1510
    %v1521 = vpack.c.b16 %v1513, %v1512
    %1530 = vmatprep.subr.bf16.mxu0 0
    %1531 = vmatpush1.bf16.msra.mxu0 %v1514
    %1532 = vmatprep.subr.bf16.mxu0 0
    %1533 = vmatpush1.bf16.msra.mxu0 %v1515
    %1534 = vmatprep.subr.bf16.mxu0 0
    %1535 = vmatpush1.bf16.msra.mxu0 %v1516
    %1536 = vmatprep.subr.bf16.mxu0 0
    %1537 = vmatpush1.bf16.msra.mxu0 %v1517
    %1538 = vmatprep.subr.bf16.mxu0 0
    %1539 = vmatpush1.bf16.msra.mxu0 %v1518
    %1540 = vmatprep.subr.bf16.mxu0 0
    %1541 = vmatpush1.bf16.msra.mxu0 %v1519
    %1542 = vmatprep.subr.bf16.mxu0 0
    %1543 = vmatpush1.bf16.msra.mxu0 %v1520
    %1544 = vmatprep.subr.bf16.mxu0 0
    %1545 = vmatpush1.bf16.msra.mxu0 %v1521
    %1546 = vmatprep.subr.bf16.mxu0 0
    %1547 = vmatpush1.bf16.msra.mxu0 0
    %1548 = vmatprep.subr.bf16.mxu0 0
    %1549 = vmatpush1.bf16.msra.mxu0 0
    %1550 = vmatprep.subr.bf16.mxu0 0
    %1551 = vmatpush1.bf16.msra.mxu0 0
    %1552 = vmatprep.subr.bf16.mxu0 0
    %1553 = vmatpush1.bf16.msra.mxu0 0
    %1554 = vmatprep.subr.bf16.mxu0 0
    %1555 = vmatpush1.bf16.msra.mxu0 0
    %1556 = vmatprep.subr.bf16.mxu0 0
    %1557 = vmatpush1.bf16.msra.mxu0 0
    %1558 = vmatprep.subr.bf16.mxu0 0
    %1559 = vmatpush1.bf16.msra.mxu0 0
    %1560 = vmatprep.subr.bf16.mxu0 0
    %1561 = vmatpush1.bf16.msra.mxu0 0
    %1562 = vmatprep.mubr.bf16.mxu0 0
    %1563 = vmatmul.mubr.bf16.gmra.mrb[0].mxu0 %v1478
    %v1564 = vpop.f32.mrb[0].mxu0
    %v1565 = vadd.f32 %v1456, %v1564
    %v1566 = vpop.f32.mrb[0].mxu0
    %v1567 = vpop.f32.mrb[0].mxu0
    %v1568 = vadd.f32 %v1459, %v1567
    %v1569 = vpop.f32.mrb[0].mxu0
    %1570 = vmatprep.mubr.bf16.mxu0 0
    %1571 = vmatmul.mubr.bf16.gmra.mrb[0].mxu0 %v1479
    %v1572 = vpop.f32.mrb[0].mxu0
    %v1573 = vadd.f32 %v1464, %v1572
    %v1574 = vpop.f32.mrb[0].mxu0
    %v1575 = vpop.f32.mrb[0].mxu0
    %v1576 = vadd.f32 %v1467, %v1575
    %v1577 = vpop.f32.mrb[0].mxu0
    %1578 = vdwg.mxu0
    %v1579 = vld [vmem:[#allocation3] sm:$0xe]
    %s1580 = scalar_lea.vmem [#allocation4], 384
    %v1581 = vld [vmem:[%s1580] sm:$0xf]
    %v1582 = vld [vmem:[%s1580 + $0x4] sm:$0xf]
    %v1583 = vld [vmem:[%s1580 + $0x8] sm:$0xf]
    %v1584 = vld [vmem:[%s1580 + $0xc] sm:$0xf]
    %v1585 = vld [vmem:[%s1580 + $0x10] sm:$0xf]
    %v1586 = vld [vmem:[%s1580 + $0x14] sm:$0xf]
    %v1587 = vld [vmem:[%s1580 + $0x18] sm:$0xf]
    %v1588 = vld [vmem:[%s1580 + $0x1c] sm:$0xf]
    %v1589 = vld [vmem:[%s1580 + $0x20] sm:$0xf]
    %v1590 = vld [vmem:[%s1580 + $0x24] sm:$0xf]
    %v1591 = vld [vmem:[%s1580 + $0x28] sm:$0xf]
    %v1592 = vld [vmem:[%s1580 + $0x2c] sm:$0xf]
    %v1593 = vld [vmem:[%s1580 + $0x30] sm:$0xf]
    %v1594 = vld [vmem:[%s1580 + $0x34] sm:$0xf]
    %v1595 = vld [vmem:[%s1580 + $0x38] sm:$0xf]
    %v1596 = vld [vmem:[%s1580 + $0x3c] sm:$0xf]
    %v1598 = vunpack.c.l.b16 %v1579
    %v1599 = vpack.c.b16 %v1343, %v1598
    %vm1600 = vcmask 1046528
    %v1601 = vrot.slane %v1599, 1
    %v1602 = vrot.slane %v1348, 1
    %v1603 = vsel %vm1600, %v1601, %v1602
    %v1604 = vrot.slane %v1349, 1
    %v1605 = vsel %vm1600, %v1602, %v1604
    %v1624 = vunpack.c.l.b16 %v1581
    %v1625 = vunpack.c.l.b16 %v1582
    %v1626 = vunpack.c.l.b16 %v1583
    %v1627 = vunpack.c.l.b16 %v1584
    %v1628 = vunpack.c.l.b16 %v1585
    %v1629 = vunpack.c.l.b16 %v1586
    %v1630 = vunpack.c.l.b16 %v1587
    %v1631 = vunpack.c.l.b16 %v1588
    %v1632 = vunpack.c.l.b16 %v1589
    %v1633 = vunpack.c.l.b16 %v1590
    %v1634 = vunpack.c.l.b16 %v1591
    %v1635 = vunpack.c.l.b16 %v1592
    %v1636 = vunpack.c.l.b16 %v1593
    %v1637 = vunpack.c.l.b16 %v1594
    %v1638 = vunpack.c.l.b16 %v1595
    %v1639 = vunpack.c.l.b16 %v1596
    %v1640 = vpack.c.b16 %v1625, %v1624
    %v1641 = vpack.c.b16 %v1627, %v1626
    %v1642 = vpack.c.b16 %v1629, %v1628
    %v1643 = vpack.c.b16 %v1631, %v1630
    %v1644 = vpack.c.b16 %v1633, %v1632
    %v1645 = vpack.c.b16 %v1635, %v1634
    %v1646 = vpack.c.b16 %v1637, %v1636
    %v1647 = vpack.c.b16 %v1639, %v1638
    %1656 = vmatprep.subr.bf16.mxu0 0
    %1657 = vmatpush1.bf16.msra.mxu0 %v1640
    %1658 = vmatprep.subr.bf16.mxu0 0
    %1659 = vmatpush1.bf16.msra.mxu0 %v1641
    %1660 = vmatprep.subr.bf16.mxu0 0
    %1661 = vmatpush1.bf16.msra.mxu0 %v1642
    %1662 = vmatprep.subr.bf16.mxu0 0
    %1663 = vmatpush1.bf16.msra.mxu0 %v1643
    %1664 = vmatprep.subr.bf16.mxu0 0
    %1665 = vmatpush1.bf16.msra.mxu0 %v1644
    %1666 = vmatprep.subr.bf16.mxu0 0
    %1667 = vmatpush1.bf16.msra.mxu0 %v1645
    %1668 = vmatprep.subr.bf16.mxu0 0
    %1669 = vmatpush1.bf16.msra.mxu0 %v1646
    %1670 = vmatprep.subr.bf16.mxu0 0
    %1671 = vmatpush1.bf16.msra.mxu0 %v1647
    %1672 = vmatprep.subr.bf16.mxu0 0
    %1673 = vmatpush1.bf16.msra.mxu0 0
    %1674 = vmatprep.subr.bf16.mxu0 0
    %1675 = vmatpush1.bf16.msra.mxu0 0
    %1676 = vmatprep.subr.bf16.mxu0 0
    %1677 = vmatpush1.bf16.msra.mxu0 0
    %1678 = vmatprep.subr.bf16.mxu0 0
    %1679 = vmatpush1.bf16.msra.mxu0 0
    %1680 = vmatprep.subr.bf16.mxu0 0
    %1681 = vmatpush1.bf16.msra.mxu0 0
    %1682 = vmatprep.subr.bf16.mxu0 0
    %1683 = vmatpush1.bf16.msra.mxu0 0
    %1684 = vmatprep.subr.bf16.mxu0 0
    %1685 = vmatpush1.bf16.msra.mxu0 0
    %1686 = vmatprep.subr.bf16.mxu0 0
    %1687 = vmatpush1.bf16.msra.mxu0 0
    %1688 = vmatprep.mubr.bf16.mxu0 0
    %1689 = vmatmul.mubr.bf16.gmra.mrb[0].mxu0 %v1603
    %v1690 = vpop.f32.mrb[0].mxu0
    %v1691 = vadd.f32 0.0, %v1690
    %v1692 = vpop.f32.mrb[0].mxu0
    %v1693 = vpop.f32.mrb[0].mxu0
    %v1694 = vadd.f32 0.0, %v1693
    %v1695 = vpop.f32.mrb[0].mxu0
    %1696 = vmatprep.mubr.bf16.mxu0 0
    %1697 = vmatmul.mubr.bf16.gmra.mrb[0].mxu0 %v1605
    %v1698 = vpop.f32.mrb[0].mxu0
    %v1699 = vadd.f32 0.0, %v1698
    %v1700 = vpop.f32.mrb[0].mxu0
    %v1701 = vpop.f32.mrb[0].mxu0
    %v1702 = vadd.f32 0.0, %v1701
    %v1703 = vpop.f32.mrb[0].mxu0
    %1704 = vdwg.mxu0
    %v1705 = vadd.f32 %v1565, %v1691
    %v1706 = vadd.f32 %v1568, %v1694
    %v1707 = vadd.f32 %v1573, %v1699
    %v1708 = vadd.f32 %v1576, %v1702
    %v1709 = vld [vmem:[#allocation3 + $0x10] sm:$0x3]
    %s1710 = scalar_lea.vmem [#allocation4], 448
    %v1711 = vld [vmem:[%s1710] sm:$0xf]
    %v1712 = vld [vmem:[%s1710 + $0x4] sm:$0xf]
    %v1713 = vld [vmem:[%s1710 + $0x8] sm:$0xf]
    %v1714 = vld [vmem:[%s1710 + $0xc] sm:$0xf]
    %v1715 = vld [vmem:[%s1710 + $0x10] sm:$0xf]
    %v1716 = vld [vmem:[%s1710 + $0x14] sm:$0xf]
    %v1717 = vld [vmem:[%s1710 + $0x18] sm:$0xf]
    %v1718 = vld [vmem:[%s1710 + $0x1c] sm:$0xf]
    %v1719 = vld [vmem:[%s1710 + $0x20] sm:$0xf]
    %v1720 = vld [vmem:[%s1710 + $0x24] sm:$0xf]
    %v1721 = vld [vmem:[%s1710 + $0x28] sm:$0xf]
    %v1722 = vld [vmem:[%s1710 + $0x2c] sm:$0xf]
    %v1723 = vld [vmem:[%s1710 + $0x30] sm:$0xf]
    %v1724 = vld [vmem:[%s1710 + $0x34] sm:$0xf]
    %v1725 = vld [vmem:[%s1710 + $0x38] sm:$0xf]
    %v1726 = vld [vmem:[%s1710 + $0x3c] sm:$0xf]
    %v1728 = vunpack.c.l.b16 %v1709
    %v1729 = vpack.c.b16 %v1728, %v1728
    %vm1730 = vsmask.f32 6400
    %v1732 = vshrl.u32 %v1599, 16
    %v1734 = vrot.slane %v1732, 1
    %v1735 = vshll.u32 %v1599, 16
    %v1737 = vrot.slane %v1735, 2
    %v1738 = vor.u32 %v1734, %v1737
    %v1739 = vrot.slane %v1363, 1
    %v1740 = vrot.slane %v1359, 2
    %v1741 = vor.u32 %v1739, %v1740
    %v1742 = vsel %vm1730, %v1738, %v1741
    %v1744 = vshrl.u32 %v1729, 16
    %v1746 = vrot.slane %v1744, 1
    %v1747 = vshll.u32 %v1729, 16
    %v1749 = vrot.slane %v1747, 2
    %v1750 = vor.u32 %v1746, %v1749
    %v1751 = vsel %vm1730, %v1741, %v1750
    %v1770 = vunpack.c.l.b16 %v1711
    %v1771 = vunpack.c.l.b16 %v1712
    %v1772 = vunpack.c.l.b16 %v1713
    %v1773 = vunpack.c.l.b16 %v1714
    %v1774 = vunpack.c.l.b16 %v1715
    %v1775 = vunpack.c.l.b16 %v1716
    %v1776 = vunpack.c.l.b16 %v1717
    %v1777 = vunpack.c.l.b16 %v1718
    %v1778 = vunpack.c.l.b16 %v1719
    %v1779 = vunpack.c.l.b16 %v1720
    %v1780 = vunpack.c.l.b16 %v1721
    %v1781 = vunpack.c.l.b16 %v1722
    %v1782 = vunpack.c.l.b16 %v1723
    %v1783 = vunpack.c.l.b16 %v1724
    %v1784 = vunpack.c.l.b16 %v1725
    %v1785 = vunpack.c.l.b16 %v1726
    %v1786 = vpack.c.b16 %v1771, %v1770
    %v1787 = vpack.c.b16 %v1773, %v1772
    %v1788 = vpack.c.b16 %v1775, %v1774
    %v1789 = vpack.c.b16 %v1777, %v1776
    %v1790 = vpack.c.b16 %v1779, %v1778
    %v1791 = vpack.c.b16 %v1781, %v1780
    %v1792 = vpack.c.b16 %v1783, %v1782
    %v1793 = vpack.c.b16 %v1785, %v1784
    %1802 = vmatprep.subr.bf16.mxu0 0
    %1803 = vmatpush1.bf16.msra.mxu0 %v1786
    %1804 = vmatprep.subr.bf16.mxu0 0
    %1805 = vmatpush1.bf16.msra.mxu0 %v1787
    %1806 = vmatprep.subr.bf16.mxu0 0
    %1807 = vmatpush1.bf16.msra.mxu0 %v1788
    %1808 = vmatprep.subr.bf16.mxu0 0
    %1809 = vmatpush1.bf16.msra.mxu0 %v1789
    %1810 = vmatprep.subr.bf16.mxu0 0
    %1811 = vmatpush1.bf16.msra.mxu0 %v1790
    %1812 = vmatprep.subr.bf16.mxu0 0
    %1813 = vmatpush1.bf16.msra.mxu0 %v1791
    %1814 = vmatprep.subr.bf16.mxu0 0
    %1815 = vmatpush1.bf16.msra.mxu0 %v1792
    %1816 = vmatprep.subr.bf16.mxu0 0
    %1817 = vmatpush1.bf16.msra.mxu0 %v1793
    %1818 = vmatprep.subr.bf16.mxu0 0
    %1819 = vmatpush1.bf16.msra.mxu0 0
    %1820 = vmatprep.subr.bf16.mxu0 0
    %1821 = vmatpush1.bf16.msra.mxu0 0
    %1822 = vmatprep.subr.bf16.mxu0 0
    %1823 = vmatpush1.bf16.msra.mxu0 0
    %1824 = vmatprep.subr.bf16.mxu0 0
    %1825 = vmatpush1.bf16.msra.mxu0 0
    %1826 = vmatprep.subr.bf16.mxu0 0
    %1827 = vmatpush1.bf16.msra.mxu0 0
    %1828 = vmatprep.subr.bf16.mxu0 0
    %1829 = vmatpush1.bf16.msra.mxu0 0
    %1830 = vmatprep.subr.bf16.mxu0 0
    %1831 = vmatpush1.bf16.msra.mxu0 0
    %1832 = vmatprep.subr.bf16.mxu0 0
    %1833 = vmatpush1.bf16.msra.mxu0 0
    %1834 = vmatprep.mubr.bf16.mxu0 0
    %1835 = vmatmul.mubr.bf16.gmra.mrb[0].mxu0 %v1742
    %v1836 = vpop.f32.mrb[0].mxu0
    %v1837 = vadd.f32 0.0, %v1836
    %v1838 = vpop.f32.mrb[0].mxu0
    %v1839 = vpop.f32.mrb[0].mxu0
    %v1840 = vadd.f32 0.0, %v1839
    %v1841 = vpop.f32.mrb[0].mxu0
    %1842 = vmatprep.mubr.bf16.mxu0 0
    %1843 = vmatmul.mubr.bf16.gmra.mrb[0].mxu0 %v1751
    %v1844 = vpop.f32.mrb[0].mxu0
    %v1845 = vadd.f32 0.0, %v1844
    %v1846 = vpop.f32.mrb[0].mxu0
    %v1847 = vpop.f32.mrb[0].mxu0
    %v1848 = vadd.f32 0.0, %v1847
    %v1849 = vpop.f32.mrb[0].mxu0
    %1850 = vdwg.mxu0
    %v1851 = vadd.f32 %v1705, %v1837
    %v1852 = vadd.f32 %v1706, %v1840
    %v1853 = vadd.f32 %v1707, %v1845
    %v1854 = vadd.f32 %v1708, %v1848
    %vm1855 = vcmp.lt.s32.totalorder %v559, 11
    %vm1856 = vcmp.lt.s32.totalorder %v560, 11
    %vm1857 = vcmp.lt.s32.totalorder %v561, 11
    %vm1858 = vcmp.lt.s32.totalorder %v562, 11
    %vm1859 = vcmp.lt.s32.totalorder %v559, 27
    %vm1860 = vcmp.lt.s32.totalorder %v560, 27
    %vm1861 = vcmp.lt.s32.totalorder %v561, 27
    %vm1862 = vcmp.lt.s32.totalorder %v562, 27
    %vm1863 = vmand %vm1177, %vm1859
    %vm1864 = vmand %vm1178, %vm1860
    %vm1865 = vmand %vm1179, %vm1861
    %vm1866 = vmand %vm1180, %vm1862
    %vm1867 = vmor %vm1855, %vm1863
    %vm1868 = vmor %vm1856, %vm1864
    %vm1869 = vmor %vm1857, %vm1865
    %vm1870 = vmor %vm1858, %vm1866
    %v1871 = vsel %vm1867, 1, 0
    %v1872 = vsel %vm1868, 1, 0
    %v1873 = vsel %vm1869, 1, 0
    %v1874 = vsel %vm1870, 1, 0
    %vm1875 = vcmp.eq.s32.totalorder %v1871, 1
    %vm1876 = vcmp.eq.s32.totalorder %v1872, 1
    %vm1877 = vcmp.eq.s32.totalorder %v1873, 1
    %vm1878 = vcmp.eq.s32.totalorder %v1874, 1
    %v1879 = vsel %vm1875, %v1851, 0.0
    %v1880 = vsel %vm1876, %v1852, 0.0
    %v1881 = vsel %vm1877, %v1853, 0.0
    %v1882 = vsel %vm1878, %v1854, 0.0
    %v1883 = vld [vmem:[%s3 + $0x7] sm:$0x1]
    %v1884 = vld [vmem:[%s3 + $0x8] sm:$0x1]
    %v1885 = vadd.f32 %v1879, %v1880
    %v1886 = vadd.f32 %v1885, %v1881
    %v1887 = vadd.f32 %v1886, %v1882
    %v1888 = vrot.slane %v1887, 4
    %v1889 = vadd.f32 %v1887, %v1888
    %v1890 = vrot.slane %v1889, 2
    %v1891 = vadd.f32 %v1889, %v1890
    %v1892 = vrot.slane %v1891, 1
    %v1893 = vadd.f32 %v1891, %v1892
    %v1894 = vmul.f32 %v1893, 0.045454547
    %v1895 = vsub.f32 %v1879, %v1894
    %v1896 = vsub.f32 %v1880, %v1894
    %v1897 = vsub.f32 %v1881, %v1894
    %v1898 = vsub.f32 %v1882, %v1894
    %v1899 = vsel %vm1875, %v1895, 0.0
    %v1900 = vsel %vm1876, %v1896, 0.0
    %v1901 = vsel %vm1877, %v1897, 0.0
    %v1902 = vsel %vm1878, %v1898, 0.0
    %v1903 = vmul.f32 %v1899, %v1899
    %v1904 = vmul.f32 %v1900, %v1900
    %v1905 = vmul.f32 %v1901, %v1901
    %v1906 = vmul.f32 %v1902, %v1902
    %v1907 = vadd.f32 %v1903, %v1904
    %v1908 = vadd.f32 %v1907, %v1905
    %v1909 = vadd.f32 %v1908, %v1906
    %v1910 = vrot.slane %v1909, 4
    %v1911 = vadd.f32 %v1909, %v1910
    %v1912 = vrot.slane %v1911, 2
    %v1913 = vadd.f32 %v1911, %v1912
    %v1914 = vrot.slane %v1913, 1
    %v1915 = vadd.f32 %v1913, %v1914
    %v1916 = vmul.f32 %v1915, 0.045454547
    %v1917 = vadd.f32 %v1916, 1e-05
    %v1918 = vrsqrt.pop %v1917
    %v1919 = vmul.f32 %v1918, %v1883
    %v1920 = vlaneseq
    %v1921 = vshrl.u32 %v1920, 7
    %v1922 = vsub.s32 0, %v1921
    %v1923 = vrot.slane %v1919, %v1922
    %v1924 = vmul.f32 %v1899, %v1923
    %v1925 = vmul.f32 %v1900, %v1923
    %v1926 = vmul.f32 %v1901, %v1923
    %v1927 = vmul.f32 %v1902, %v1923
    %v1928 = vlaneseq
    %v1929 = vshrl.u32 %v1928, 7
    %v1930 = vsub.s32 0, %v1929
    %v1931 = vrot.slane %v1884, %v1930
    %v1932 = vadd.f32 %v1924, %v1931
    %v1933 = vadd.f32 %v1925, %v1931
    %v1934 = vadd.f32 %v1926, %v1931
    %v1935 = vadd.f32 %v1927, %v1931
    %vm1936 = vcmp.ge.f32.partialorder %v1932, 0.0
    %vm1937 = vcmp.ge.f32.partialorder %v1933, 0.0
    %vm1938 = vcmp.ge.f32.partialorder %v1934, 0.0
    %vm1939 = vcmp.ge.f32.partialorder %v1935, 0.0
    %v1940 = vmul.f32 %v1932, 0.2
    %v1941 = vmul.f32 %v1933, 0.2
    %v1942 = vmul.f32 %v1934, 0.2
    %v1943 = vmul.f32 %v1935, 0.2
    %v1944 = vsel %vm1936, %v1932, %v1940
    %v1945 = vsel %vm1937, %v1933, %v1941
    %v1946 = vsel %vm1938, %v1934, %v1942
    %v1947 = vsel %vm1939, %v1935, %v1943
    %v1948 = vsel %vm1875, %v1944, 0.0
    %v1949 = vsel %vm1876, %v1945, 0.0
    %v1950 = vsel %vm1877, %v1946, 0.0
    %v1951 = vsel %vm1878, %v1947, 0.0
    %1952 = vst [vmem:[#allocation2] sm:$0xff] %v1948
    %1953 = vst [vmem:[#allocation2 + $0x8] sm:$0xff] %v1949
    %1954 = vst [vmem:[#allocation2 + $0x10] sm:$0xff] %v1950
    %1955 = vst [vmem:[#allocation2 + $0x18] sm:$0xff] %v1951
    %v1956 = vld [vmem:[#allocation2] sm:$0xff]
    %v1957 = vld [vmem:[#allocation2 + $0x8] sm:$0xff]
    %v1958 = vld [vmem:[#allocation2 + $0x10] sm:$0xff]
    %v1959 = vld [vmem:[#allocation2 + $0x18] sm:$0xff]
    %v1960 = vpack.c.bf16 %v1957, %v1956
    %v1961 = vpack.c.bf16 %v1959, %v1958
    %s1962 = scalar_lea.vmem [#allocation4], 512
    %v1963 = vld [vmem:[%s1962] sm:$0xf]
    %v1964 = vld [vmem:[%s1962 + $0x4] sm:$0xf]
    %v1965 = vld [vmem:[%s1962 + $0x8] sm:$0xf]
    %v1966 = vld [vmem:[%s1962 + $0xc] sm:$0xf]
    %v1967 = vld [vmem:[%s1962 + $0x10] sm:$0xf]
    %v1968 = vld [vmem:[%s1962 + $0x14] sm:$0xf]
    %v1969 = vld [vmem:[%s1962 + $0x18] sm:$0xf]
    %v1970 = vld [vmem:[%s1962 + $0x1c] sm:$0xf]
    %v1971 = vld [vmem:[%s1962 + $0x20] sm:$0xf]
    %v1972 = vld [vmem:[%s1962 + $0x24] sm:$0xf]
    %v1973 = vld [vmem:[%s1962 + $0x28] sm:$0xf]
    %v1974 = vld [vmem:[%s1962 + $0x2c] sm:$0xf]
    %v1975 = vld [vmem:[%s1962 + $0x30] sm:$0xf]
    %v1976 = vld [vmem:[%s1962 + $0x34] sm:$0xf]
    %v1977 = vld [vmem:[%s1962 + $0x38] sm:$0xf]
    %v1978 = vld [vmem:[%s1962 + $0x3c] sm:$0xf]
    %v1979 = vld [vmem:[#allocation2 + $0x1] sm:$0xff]
    %v1980 = vld [vmem:[#allocation2 + $0x9] sm:$0xff]
    %v1981 = vld [vmem:[#allocation2 + $0x11] sm:$0xff]
    %v1982 = vld [vmem:[#allocation2 + $0x19] sm:$0xff]
    %v1983 = vpack.c.bf16 %v1980, %v1979
    %v1984 = vpack.c.bf16 %v1982, %v1981
    %s1985 = scalar_lea.vmem [#allocation4], 576
    %v1986 = vld [vmem:[%s1985] sm:$0xf]
    %v1987 = vld [vmem:[%s1985 + $0x4] sm:$0xf]
    %v1988 = vld [vmem:[%s1985 + $0x8] sm:$0xf]
    %v1989 = vld [vmem:[%s1985 + $0xc] sm:$0xf]
    %v1990 = vld [vmem:[%s1985 + $0x10] sm:$0xf]
    %v1991 = vld [vmem:[%s1985 + $0x14] sm:$0xf]
    %v1992 = vld [vmem:[%s1985 + $0x18] sm:$0xf]
    %v1993 = vld [vmem:[%s1985 + $0x1c] sm:$0xf]
    %v1994 = vld [vmem:[%s1985 + $0x20] sm:$0xf]
    %v1995 = vld [vmem:[%s1985 + $0x24] sm:$0xf]
    %v1996 = vld [vmem:[%s1985 + $0x28] sm:$0xf]
    %v1997 = vld [vmem:[%s1985 + $0x2c] sm:$0xf]
    %v1998 = vld [vmem:[%s1985 + $0x30] sm:$0xf]
    %v1999 = vld [vmem:[%s1985 + $0x34] sm:$0xf]
    %v2000 = vld [vmem:[%s1985 + $0x38] sm:$0xf]
    %v2001 = vld [vmem:[%s1985 + $0x3c] sm:$0xf]
    %v2018 = vunpack.c.l.b16 %v1986
    %v2019 = vunpack.c.l.b16 %v1987
    %v2020 = vunpack.c.l.b16 %v1988
    %v2021 = vunpack.c.l.b16 %v1989
    %v2022 = vunpack.c.l.b16 %v1990
    %v2023 = vunpack.c.l.b16 %v1991
    %v2024 = vunpack.c.l.b16 %v1992
    %v2025 = vunpack.c.l.b16 %v1993
    %v2026 = vunpack.c.l.b16 %v1994
    %v2027 = vunpack.c.l.b16 %v1995
    %v2028 = vunpack.c.l.b16 %v1996
    %v2029 = vunpack.c.l.b16 %v1997
    %v2030 = vunpack.c.l.b16 %v1998
    %v2031 = vunpack.c.l.b16 %v1999
    %v2032 = vunpack.c.l.b16 %v2000
    %v2033 = vunpack.c.l.b16 %v2001
    %v2034 = vpack.c.b16 %v2019, %v2018
    %v2035 = vpack.c.b16 %v2021, %v2020
    %v2036 = vpack.c.b16 %v2023, %v2022
    %v2037 = vpack.c.b16 %v2025, %v2024
    %v2038 = vpack.c.b16 %v2027, %v2026
    %v2039 = vpack.c.b16 %v2029, %v2028
    %v2040 = vpack.c.b16 %v2031, %v2030
    %v2041 = vpack.c.b16 %v2033, %v2032
    %2050 = vmatprep.subr.bf16.mxu0 0
    %2051 = vmatpush1.bf16.msra.mxu0 %v2034
    %2052 = vmatprep.subr.bf16.mxu0 0
    %2053 = vmatpush1.bf16.msra.mxu0 %v2035
    %2054 = vmatprep.subr.bf16.mxu0 0
    %2055 = vmatpush1.bf16.msra.mxu0 %v2036
    %2056 = vmatprep.subr.bf16.mxu0 0
    %2057 = vmatpush1.bf16.msra.mxu0 %v2037
    %2058 = vmatprep.subr.bf16.mxu0 0
    %2059 = vmatpush1.bf16.msra.mxu0 %v2038
    %2060 = vmatprep.subr.bf16.mxu0 0
    %2061 = vmatpush1.bf16.msra.mxu0 %v2039
    %2062 = vmatprep.subr.bf16.mxu0 0
    %2063 = vmatpush1.bf16.msra.mxu0 %v2040
    %2064 = vmatprep.subr.bf16.mxu0 0
    %2065 = vmatpush1.bf16.msra.mxu0 %v2041
    %2066 = vmatprep.subr.bf16.mxu0 0
    %2067 = vmatpush1.bf16.msra.mxu0 0
    %2068 = vmatprep.subr.bf16.mxu0 0
    %2069 = vmatpush1.bf16.msra.mxu0 0
    %2070 = vmatprep.subr.bf16.mxu0 0
    %2071 = vmatpush1.bf16.msra.mxu0 0
    %2072 = vmatprep.subr.bf16.mxu0 0
    %2073 = vmatpush1.bf16.msra.mxu0 0
    %2074 = vmatprep.subr.bf16.mxu0 0
    %2075 = vmatpush1.bf16.msra.mxu0 0
    %2076 = vmatprep.subr.bf16.mxu0 0
    %2077 = vmatpush1.bf16.msra.mxu0 0
    %2078 = vmatprep.subr.bf16.mxu0 0
    %2079 = vmatpush1.bf16.msra.mxu0 0
    %2080 = vmatprep.subr.bf16.mxu0 0
    %2081 = vmatpush1.bf16.msra.mxu0 0
    %2082 = vmatprep.mubr.bf16.mxu0 0
    %2083 = vmatmul.mubr.bf16.gmra.mrb[0].mxu0 %v1983
    %v2084 = vpop.f32.mrb[0].mxu0
    %v2085 = vadd.f32 0.0, %v2084
    %v2086 = vpop.f32.mrb[0].mxu0
    %v2087 = vpop.f32.mrb[0].mxu0
    %v2088 = vadd.f32 0.0, %v2087
    %v2089 = vpop.f32.mrb[0].mxu0
    %2090 = vmatprep.mubr.bf16.mxu0 0
    %2091 = vmatmul.mubr.bf16.gmra.mrb[0].mxu0 %v1984
    %v2092 = vpop.f32.mrb[0].mxu0
    %v2093 = vadd.f32 0.0, %v2092
    %v2094 = vpop.f32.mrb[0].mxu0
    %v2095 = vpop.f32.mrb[0].mxu0
    %v2096 = vadd.f32 0.0, %v2095
    %v2097 = vpop.f32.mrb[0].mxu0
    %2098 = vdwg.mxu0
    %v2115 = vunpack.c.l.b16 %v1963
    %v2116 = vunpack.c.l.b16 %v1964
    %v2117 = vunpack.c.l.b16 %v1965
    %v2118 = vunpack.c.l.b16 %v1966
    %v2119 = vunpack.c.l.b16 %v1967
    %v2120 = vunpack.c.l.b16 %v1968
    %v2121 = vunpack.c.l.b16 %v1969
    %v2122 = vunpack.c.l.b16 %v1970
    %v2123 = vunpack.c.l.b16 %v1971
    %v2124 = vunpack.c.l.b16 %v1972
    %v2125 = vunpack.c.l.b16 %v1973
    %v2126 = vunpack.c.l.b16 %v1974
    %v2127 = vunpack.c.l.b16 %v1975
    %v2128 = vunpack.c.l.b16 %v1976
    %v2129 = vunpack.c.l.b16 %v1977
    %v2130 = vunpack.c.l.b16 %v1978
    %v2131 = vpack.c.b16 %v2116, %v2115
    %v2132 = vpack.c.b16 %v2118, %v2117
    %v2133 = vpack.c.b16 %v2120, %v2119
    %v2134 = vpack.c.b16 %v2122, %v2121
    %v2135 = vpack.c.b16 %v2124, %v2123
    %v2136 = vpack.c.b16 %v2126, %v2125
    %v2137 = vpack.c.b16 %v2128, %v2127
    %v2138 = vpack.c.b16 %v2130, %v2129
    %2147 = vmatprep.subr.bf16.mxu0 0
    %2148 = vmatpush1.bf16.msra.mxu0 %v2131
    %2149 = vmatprep.subr.bf16.mxu0 0
    %2150 = vmatpush1.bf16.msra.mxu0 %v2132
    %2151 = vmatprep.subr.bf16.mxu0 0
    %2152 = vmatpush1.bf16.msra.mxu0 %v2133
    %2153 = vmatprep.subr.bf16.mxu0 0
    %2154 = vmatpush1.bf16.msra.mxu0 %v2134
    %2155 = vmatprep.subr.bf16.mxu0 0
    %2156 = vmatpush1.bf16.msra.mxu0 %v2135
    %2157 = vmatprep.subr.bf16.mxu0 0
    %2158 = vmatpush1.bf16.msra.mxu0 %v2136
    %2159 = vmatprep.subr.bf16.mxu0 0
    %2160 = vmatpush1.bf16.msra.mxu0 %v2137
    %2161 = vmatprep.subr.bf16.mxu0 0
    %2162 = vmatpush1.bf16.msra.mxu0 %v2138
    %2163 = vmatprep.subr.bf16.mxu0 0
    %2164 = vmatpush1.bf16.msra.mxu0 0
    %2165 = vmatprep.subr.bf16.mxu0 0
    %2166 = vmatpush1.bf16.msra.mxu0 0
    %2167 = vmatprep.subr.bf16.mxu0 0
    %2168 = vmatpush1.bf16.msra.mxu0 0
    %2169 = vmatprep.subr.bf16.mxu0 0
    %2170 = vmatpush1.bf16.msra.mxu0 0
    %2171 = vmatprep.subr.bf16.mxu0 0
    %2172 = vmatpush1.bf16.msra.mxu0 0
    %2173 = vmatprep.subr.bf16.mxu0 0
    %2174 = vmatpush1.bf16.msra.mxu0 0
    %2175 = vmatprep.subr.bf16.mxu0 0
    %2176 = vmatpush1.bf16.msra.mxu0 0
    %2177 = vmatprep.subr.bf16.mxu0 0
    %2178 = vmatpush1.bf16.msra.mxu0 0
    %2179 = vmatprep.mubr.bf16.mxu0 0
    %2180 = vmatmul.mubr.bf16.gmra.mrb[0].mxu0 %v1960
    %v2181 = vpop.f32.mrb[0].mxu0
    %v2182 = vadd.f32 %v2085, %v2181
    %v2183 = vpop.f32.mrb[0].mxu0
    %v2184 = vpop.f32.mrb[0].mxu0
    %v2185 = vadd.f32 %v2088, %v2184
    %v2186 = vpop.f32.mrb[0].mxu0
    %2187 = vmatprep.mubr.bf16.mxu0 0
    %2188 = vmatmul.mubr.bf16.gmra.mrb[0].mxu0 %v1961
    %v2189 = vpop.f32.mrb[0].mxu0
    %v2190 = vadd.f32 %v2093, %v2189
    %v2191 = vpop.f32.mrb[0].mxu0
    %v2192 = vpop.f32.mrb[0].mxu0
    %v2193 = vadd.f32 %v2096, %v2192
    %v2194 = vpop.f32.mrb[0].mxu0
    %2195 = vdwg.mxu0
    %v2196 = vld [vmem:[#allocation2 + $0x2] sm:$0xff]
    %v2197 = vld [vmem:[#allocation2 + $0xa] sm:$0xff]
    %v2198 = vld [vmem:[#allocation2 + $0x12] sm:$0xff]
    %v2199 = vld [vmem:[#allocation2 + $0x1a] sm:$0xff]
    %v2200 = vpack.c.bf16 %v2197, %v2196
    %v2201 = vpack.c.bf16 %v2199, %v2198
    %s2202 = scalar_lea.vmem [#allocation4], 640
    %v2203 = vld [vmem:[%s2202] sm:$0xf]
    %v2204 = vld [vmem:[%s2202 + $0x4] sm:$0xf]
    %v2205 = vld [vmem:[%s2202 + $0x8] sm:$0xf]
    %v2206 = vld [vmem:[%s2202 + $0xc] sm:$0xf]
    %v2207 = vld [vmem:[%s2202 + $0x10] sm:$0xf]
    %v2208 = vld [vmem:[%s2202 + $0x14] sm:$0xf]
    %v2209 = vld [vmem:[%s2202 + $0x18] sm:$0xf]
    %v2210 = vld [vmem:[%s2202 + $0x1c] sm:$0xf]
    %v2211 = vld [vmem:[%s2202 + $0x20] sm:$0xf]
    %v2212 = vld [vmem:[%s2202 + $0x24] sm:$0xf]
    %v2213 = vld [vmem:[%s2202 + $0x28] sm:$0xf]
    %v2214 = vld [vmem:[%s2202 + $0x2c] sm:$0xf]
    %v2215 = vld [vmem:[%s2202 + $0x30] sm:$0xf]
    %v2216 = vld [vmem:[%s2202 + $0x34] sm:$0xf]
    %v2217 = vld [vmem:[%s2202 + $0x38] sm:$0xf]
    %v2218 = vld [vmem:[%s2202 + $0x3c] sm:$0xf]
    %v2235 = vunpack.c.l.b16 %v2203
    %v2236 = vunpack.c.l.b16 %v2204
    %v2237 = vunpack.c.l.b16 %v2205
    %v2238 = vunpack.c.l.b16 %v2206
    %v2239 = vunpack.c.l.b16 %v2207
    %v2240 = vunpack.c.l.b16 %v2208
    %v2241 = vunpack.c.l.b16 %v2209
    %v2242 = vunpack.c.l.b16 %v2210
    %v2243 = vunpack.c.l.b16 %v2211
    %v2244 = vunpack.c.l.b16 %v2212
    %v2245 = vunpack.c.l.b16 %v2213
    %v2246 = vunpack.c.l.b16 %v2214
    %v2247 = vunpack.c.l.b16 %v2215
    %v2248 = vunpack.c.l.b16 %v2216
    %v2249 = vunpack.c.l.b16 %v2217
    %v2250 = vunpack.c.l.b16 %v2218
    %v2251 = vpack.c.b16 %v2236, %v2235
    %v2252 = vpack.c.b16 %v2238, %v2237
    %v2253 = vpack.c.b16 %v2240, %v2239
    %v2254 = vpack.c.b16 %v2242, %v2241
    %v2255 = vpack.c.b16 %v2244, %v2243
    %v2256 = vpack.c.b16 %v2246, %v2245
    %v2257 = vpack.c.b16 %v2248, %v2247
    %v2258 = vpack.c.b16 %v2250, %v2249
    %2267 = vmatprep.subr.bf16.mxu0 0
    %2268 = vmatpush1.bf16.msra.mxu0 %v2251
    %2269 = vmatprep.subr.bf16.mxu0 0
    %2270 = vmatpush1.bf16.msra.mxu0 %v2252
    %2271 = vmatprep.subr.bf16.mxu0 0
    %2272 = vmatpush1.bf16.msra.mxu0 %v2253
    %2273 = vmatprep.subr.bf16.mxu0 0
    %2274 = vmatpush1.bf16.msra.mxu0 %v2254
    %2275 = vmatprep.subr.bf16.mxu0 0
    %2276 = vmatpush1.bf16.msra.mxu0 %v2255
    %2277 = vmatprep.subr.bf16.mxu0 0
    %2278 = vmatpush1.bf16.msra.mxu0 %v2256
    %2279 = vmatprep.subr.bf16.mxu0 0
    %2280 = vmatpush1.bf16.msra.mxu0 %v2257
    %2281 = vmatprep.subr.bf16.mxu0 0
    %2282 = vmatpush1.bf16.msra.mxu0 %v2258
    %2283 = vmatprep.subr.bf16.mxu0 0
    %2284 = vmatpush1.bf16.msra.mxu0 0
    %2285 = vmatprep.subr.bf16.mxu0 0
    %2286 = vmatpush1.bf16.msra.mxu0 0
    %2287 = vmatprep.subr.bf16.mxu0 0
    %2288 = vmatpush1.bf16.msra.mxu0 0
    %2289 = vmatprep.subr.bf16.mxu0 0
    %2290 = vmatpush1.bf16.msra.mxu0 0
    %2291 = vmatprep.subr.bf16.mxu0 0
    %2292 = vmatpush1.bf16.msra.mxu0 0
    %2293 = vmatprep.subr.bf16.mxu0 0
    %2294 = vmatpush1.bf16.msra.mxu0 0
    %2295 = vmatprep.subr.bf16.mxu0 0
    %2296 = vmatpush1.bf16.msra.mxu0 0
    %2297 = vmatprep.subr.bf16.mxu0 0
    %2298 = vmatpush1.bf16.msra.mxu0 0
    %2299 = vmatprep.mubr.bf16.mxu0 0
    %2300 = vmatmul.mubr.bf16.gmra.mrb[0].mxu0 %v2200
    %v2301 = vpop.f32.mrb[0].mxu0
    %v2302 = vadd.f32 0.0, %v2301
    %v2303 = vpop.f32.mrb[0].mxu0
    %v2304 = vpop.f32.mrb[0].mxu0
    %v2305 = vadd.f32 0.0, %v2304
    %v2306 = vpop.f32.mrb[0].mxu0
    %2307 = vmatprep.mubr.bf16.mxu0 0
    %2308 = vmatmul.mubr.bf16.gmra.mrb[0].mxu0 %v2201
    %v2309 = vpop.f32.mrb[0].mxu0
    %v2310 = vadd.f32 0.0, %v2309
    %v2311 = vpop.f32.mrb[0].mxu0
    %v2312 = vpop.f32.mrb[0].mxu0
    %v2313 = vadd.f32 0.0, %v2312
    %v2314 = vpop.f32.mrb[0].mxu0
    %2315 = vdwg.mxu0
    %v2316 = vadd.f32 %v2182, %v2302
    %v2317 = vadd.f32 %v2185, %v2305
    %v2318 = vadd.f32 %v2190, %v2310
    %v2319 = vadd.f32 %v2193, %v2313
    %v2320 = vld [vmem:[#allocation2 + $0x3] sm:$0xff]
    %v2321 = vld [vmem:[#allocation2 + $0xb] sm:$0xff]
    %v2322 = vld [vmem:[#allocation2 + $0x13] sm:$0xff]
    %v2323 = vld [vmem:[#allocation2 + $0x1b] sm:$0xff]
    %v2324 = vpack.c.bf16 %v2321, %v2320
    %v2325 = vpack.c.bf16 %v2323, %v2322
    %s2326 = scalar_lea.vmem [#allocation4], 704
    %v2327 = vld [vmem:[%s2326] sm:$0xf]
    %v2328 = vld [vmem:[%s2326 + $0x4] sm:$0xf]
    %v2329 = vld [vmem:[%s2326 + $0x8] sm:$0xf]
    %v2330 = vld [vmem:[%s2326 + $0xc] sm:$0xf]
    %v2331 = vld [vmem:[%s2326 + $0x10] sm:$0xf]
    %v2332 = vld [vmem:[%s2326 + $0x14] sm:$0xf]
    %v2333 = vld [vmem:[%s2326 + $0x18] sm:$0xf]
    %v2334 = vld [vmem:[%s2326 + $0x1c] sm:$0xf]
    %v2335 = vld [vmem:[%s2326 + $0x20] sm:$0xf]
    %v2336 = vld [vmem:[%s2326 + $0x24] sm:$0xf]
    %v2337 = vld [vmem:[%s2326 + $0x28] sm:$0xf]
    %v2338 = vld [vmem:[%s2326 + $0x2c] sm:$0xf]
    %v2339 = vld [vmem:[%s2326 + $0x30] sm:$0xf]
    %v2340 = vld [vmem:[%s2326 + $0x34] sm:$0xf]
    %v2341 = vld [vmem:[%s2326 + $0x38] sm:$0xf]
    %v2342 = vld [vmem:[%s2326 + $0x3c] sm:$0xf]
    %v2359 = vunpack.c.l.b16 %v2327
    %v2360 = vunpack.c.l.b16 %v2328
    %v2361 = vunpack.c.l.b16 %v2329
    %v2362 = vunpack.c.l.b16 %v2330
    %v2363 = vunpack.c.l.b16 %v2331
    %v2364 = vunpack.c.l.b16 %v2332
    %v2365 = vunpack.c.l.b16 %v2333
    %v2366 = vunpack.c.l.b16 %v2334
    %v2367 = vunpack.c.l.b16 %v2335
    %v2368 = vunpack.c.l.b16 %v2336
    %v2369 = vunpack.c.l.b16 %v2337
    %v2370 = vunpack.c.l.b16 %v2338
    %v2371 = vunpack.c.l.b16 %v2339
    %v2372 = vunpack.c.l.b16 %v2340
    %v2373 = vunpack.c.l.b16 %v2341
    %v2374 = vunpack.c.l.b16 %v2342
    %v2375 = vpack.c.b16 %v2360, %v2359
    %v2376 = vpack.c.b16 %v2362, %v2361
    %v2377 = vpack.c.b16 %v2364, %v2363
    %v2378 = vpack.c.b16 %v2366, %v2365
    %v2379 = vpack.c.b16 %v2368, %v2367
    %v2380 = vpack.c.b16 %v2370, %v2369
    %v2381 = vpack.c.b16 %v2372, %v2371
    %v2382 = vpack.c.b16 %v2374, %v2373
    %2391 = vmatprep.subr.bf16.mxu0 0
    %2392 = vmatpush1.bf16.msra.mxu0 %v2375
    %2393 = vmatprep.subr.bf16.mxu0 0
    %2394 = vmatpush1.bf16.msra.mxu0 %v2376
    %2395 = vmatprep.subr.bf16.mxu0 0
    %2396 = vmatpush1.bf16.msra.mxu0 %v2377
    %2397 = vmatprep.subr.bf16.mxu0 0
    %2398 = vmatpush1.bf16.msra.mxu0 %v2378
    %2399 = vmatprep.subr.bf16.mxu0 0
    %2400 = vmatpush1.bf16.msra.mxu0 %v2379
    %2401 = vmatprep.subr.bf16.mxu0 0
    %2402 = vmatpush1.bf16.msra.mxu0 %v2380
    %2403 = vmatprep.subr.bf16.mxu0 0
    %2404 = vmatpush1.bf16.msra.mxu0 %v2381
    %2405 = vmatprep.subr.bf16.mxu0 0
    %2406 = vmatpush1.bf16.msra.mxu0 %v2382
    %2407 = vmatprep.subr.bf16.mxu0 0
    %2408 = vmatpush1.bf16.msra.mxu0 0
    %2409 = vmatprep.subr.bf16.mxu0 0
    %2410 = vmatpush1.bf16.msra.mxu0 0
    %2411 = vmatprep.subr.bf16.mxu0 0
    %2412 = vmatpush1.bf16.msra.mxu0 0
    %2413 = vmatprep.subr.bf16.mxu0 0
    %2414 = vmatpush1.bf16.msra.mxu0 0
    %2415 = vmatprep.subr.bf16.mxu0 0
    %2416 = vmatpush1.bf16.msra.mxu0 0
    %2417 = vmatprep.subr.bf16.mxu0 0
    %2418 = vmatpush1.bf16.msra.mxu0 0
    %2419 = vmatprep.subr.bf16.mxu0 0
    %2420 = vmatpush1.bf16.msra.mxu0 0
    %2421 = vmatprep.subr.bf16.mxu0 0
    %2422 = vmatpush1.bf16.msra.mxu0 0
    %2423 = vmatprep.mubr.bf16.mxu0 0
    %2424 = vmatmul.mubr.bf16.gmra.mrb[0].mxu0 %v2324
    %v2425 = vpop.f32.mrb[0].mxu0
    %v2426 = vadd.f32 0.0, %v2425
    %v2427 = vpop.f32.mrb[0].mxu0
    %v2428 = vpop.f32.mrb[0].mxu0
    %v2429 = vadd.f32 0.0, %v2428
    %v2430 = vpop.f32.mrb[0].mxu0
    %2431 = vmatprep.mubr.bf16.mxu0 0
    %2432 = vmatmul.mubr.bf16.gmra.mrb[0].mxu0 %v2325
    %v2433 = vpop.f32.mrb[0].mxu0
    %v2434 = vadd.f32 0.0, %v2433
    %v2435 = vpop.f32.mrb[0].mxu0
    %v2436 = vpop.f32.mrb[0].mxu0
    %v2437 = vadd.f32 0.0, %v2436
    %v2438 = vpop.f32.mrb[0].mxu0
    %2439 = vdwg.mxu0
    %v2440 = vadd.f32 %v2316, %v2426
    %v2441 = vadd.f32 %v2317, %v2429
    %v2442 = vadd.f32 %v2318, %v2434
    %v2443 = vadd.f32 %v2319, %v2437
    %v2444 = vld [vmem:[%s3 + $0x9] sm:$0x1]
    %v2445 = vlaneseq
    %v2446 = vshrl.u32 %v2445, 7
    %v2447 = vsub.s32 0, %v2446
    %v2448 = vrot.slane %v2444, %v2447
    %v2449 = vadd.f32 %v2440, %v2448
    %v2450 = vadd.f32 %v2441, %v2448
    %v2451 = vadd.f32 %v2442, %v2448
    %v2452 = vadd.f32 %v2443, %v2448
    %vm2453 = vcmp.lt.s32.totalorder %v559, 8
    %vm2454 = vcmp.lt.s32.totalorder %v560, 8
    %vm2455 = vcmp.lt.s32.totalorder %v561, 8
    %vm2456 = vcmp.lt.s32.totalorder %v562, 8
    %vm2457 = vcmp.lt.s32.totalorder %v559, 24
    %vm2458 = vcmp.lt.s32.totalorder %v560, 24
    %vm2459 = vcmp.lt.s32.totalorder %v561, 24
    %vm2460 = vcmp.lt.s32.totalorder %v562, 24
    %vm2461 = vmand %vm1177, %vm2457
    %vm2462 = vmand %vm1178, %vm2458
    %vm2463 = vmand %vm1179, %vm2459
    %vm2464 = vmand %vm1180, %vm2460
    %vm2465 = vmor %vm2453, %vm2461
    %vm2466 = vmor %vm2454, %vm2462
    %vm2467 = vmor %vm2455, %vm2463
    %vm2468 = vmor %vm2456, %vm2464
    %v2469 = vsel %vm2465, 1, 0
    %v2470 = vsel %vm2466, 1, 0
    %v2471 = vsel %vm2467, 1, 0
    %v2472 = vsel %vm2468, 1, 0
    %vm2473 = vcmp.eq.s32.totalorder %v2469, 1
    %vm2474 = vcmp.eq.s32.totalorder %v2470, 1
    %vm2475 = vcmp.eq.s32.totalorder %v2471, 1
    %vm2476 = vcmp.eq.s32.totalorder %v2472, 1
    %v2477 = vsel %vm2473, %v2449, 0.0
    %v2478 = vsel %vm2474, %v2450, 0.0
    %v2479 = vsel %vm2475, %v2451, 0.0
    %v2480 = vsel %vm2476, %v2452, 0.0
    %2481 = vst [vmem:[%s4] sm:$0xff] %v2477
    %2482 = vst [vmem:[%s4 + $0x8] sm:$0xff] %v2478
    %2483 = vst [vmem:[%s4 + $0x10] sm:$0xff] %v2479
    %2484 = vst [vmem:[%s4 + $0x18] sm:$0xff] %v2480
    // Predicated region
    $region22: #{_lambda_.1} parent=1 // pred_check
      _
    $region23: #{_lambda_.1} parent=1 // pred_check_branch
      %2486 = sbr.rel (0) target = $region25
    $region24: #{_lambda_.1} parent=1 // pred_region
      _
    $region25: #{_lambda_.1} parent=1 // pred_fallthru
      _
    // Predicated region
    $region26: #{_lambda_.1} parent=1 // pred_check
      _
    $region27: #{_lambda_.1} parent=1 // pred_check_branch
      %2488 = sbr.rel (0) target = $region29
    $region28: #{_lambda_.1} parent=1 // pred_region
      _
    $region29: #{_lambda_.1} parent=1 // pred_fallthru
      _
    %2489 = vsyncpa [#allocation5], 1

</llo_original>
